<compile_context>
chip_gen: v5e
topology: v5e:2x2
jax: 0.10.0
libtpu: 0.0.40
codegen_flags: <defaults>
</compile_context>

<pallas_src>
import math
import jax
import jax.numpy as jnp
from jax import lax
from jax.experimental import pallas as pl
from jax.experimental.pallas import tpu as pltpu


def _agent_rollout_kernel(x_ref, h0_ref,
                          w1_ref, b1_ref,
                          wih_ref, bih_ref,
                          whh_ref, bhh_ref,
                          w2_ref, b2_ref,
                          w3_ref, b3_ref,
                          w4_ref, b4_ref,
                          q_ref, hout_ref,
                          gx_scr, hall_scr):
    f32 = jnp.float32
    T, Bt, Din = x_ref.shape
    H = h0_ref.shape[-1]
    A = w4_ref.shape[-1]

    # ---------- Batched pre-pass (no recurrence): fc1 + ReLU, GRU x-projection
    x = x_ref[...].astype(f32).reshape(T * Bt, Din)
    x1 = jnp.dot(x, w1_ref[...], preferred_element_type=f32) + b1_ref[...]
    x1 = jnp.maximum(x1, 0.0)
    gx = jnp.dot(x1, wih_ref[...], preferred_element_type=f32) + bih_ref[...]
    gx_scr[...] = gx.reshape(T, Bt, 3 * H)

    # ---------- Sequential recurrence: only the h-dependent matmul is serial.
    def step(t, h):
        gxt = gx_scr[t]                                               # (Bt, 3H)
        gh = jnp.dot(h, whh_ref[...], preferred_element_type=f32) + bhh_ref[...]
        # r|z share one sigmoid pass; gxt / gh slices are lane-aligned.
        rz = jax.nn.sigmoid(gxt[:, :2 * H] + gh[:, :2 * H])
        r = rz[:, :H]
        z = rz[:, H:]
        n = jnp.tanh(gxt[:, 2 * H:] + r * gh[:, 2 * H:])
        h_new = (1.0 - z) * n + z * h
        hall_scr[t] = h_new
        return h_new

    h0 = h0_ref[...].astype(f32)
    h_final = lax.fori_loop(0, T, step, h0, unroll=True if T <= 16 else False)
    hout_ref[...] = h_final.astype(hout_ref.dtype)

    # ---------- Batched post-pass: fc2/fc3/fc4 over all T*Bt hidden states.
    hs = hall_scr[...].reshape(T * Bt, H)
    q = jnp.dot(hs, w2_ref[...], preferred_element_type=f32) + b2_ref[...]
    q = jnp.maximum(q, 0.0)
    q = jnp.dot(q, w3_ref[...], preferred_element_type=f32) + b3_ref[...]
    q = jnp.maximum(q, 0.0)
    # fc4 weight is lane-padded to A (multiple of 128) -> unmasked full-lane store.
    q = jnp.dot(q, w4_ref[...], preferred_element_type=f32) + b4_ref[...]
    q_ref[...] = q.reshape(T, Bt, A).astype(q_ref.dtype)


def prepare_fused_params(params):
    """Build the padded weights consumed by the kernel (done once)."""
    H = params["w2"].shape[0]
    n_actions = params["w4"].shape[-1]
    a_pad = 128 * pl.cdiv(n_actions, 128)

    # Lane-pad fc4 to a multiple of 128 output lanes (zeros).
    w4p = jnp.zeros((H, a_pad), jnp.float32).at[:, :n_actions].set(params["w4"])
    b4p = jnp.zeros((1, a_pad), jnp.float32).at[:, :n_actions].set(params["b4"])

    return {
        "w1": params["w1"], "b1": params["b1"],
        "w_ih": params["w_ih"], "b_ih": params["b_ih"],
        "w_hh": params["w_hh"], "b_hh": params["b_hh"],
        "w2": params["w2"], "b2": params["b2"],
        "w3": params["w3"], "b3": params["b3"],
        "w4p": w4p, "b4p": b4p,
        "n_actions": n_actions,
    }


def rnn_agent_forward_seq(inputs_seq, hidden_state, fused, *, batch_block=None):
    """Run T recurrent steps in one pallas_call.

    inputs_seq: (T, B, D_in); hidden_state: (B, H).
    Returns q_seq (T, B, n_actions) and the final hidden state (B, H).
    """
    T, B, Din = inputs_seq.shape
    H = hidden_state.shape[-1]
    n_actions = fused["n_actions"]
    a_pad = fused["w4p"].shape[-1]

    Bt = B if batch_block is None else batch_block
    assert B % Bt == 0, "batch_block must divide B"
    nb = B // Bt

    const = lambda b: (0, 0)
    in_specs = [
        pl.BlockSpec((T, Bt, Din), lambda b: (0, b, 0)),       # inputs (full rollout)
        pl.BlockSpec((Bt, H), lambda b: (b, 0)),               # initial hidden
        pl.BlockSpec((Din, H), const), pl.BlockSpec((1, H), const),            # fc1
        pl.BlockSpec((H, 3 * H), const), pl.BlockSpec((1, 3 * H), const),      # GRU W_ih
        pl.BlockSpec((H, 3 * H), const), pl.BlockSpec((1, 3 * H), const),      # GRU W_hh
        pl.BlockSpec((H, H), const), pl.BlockSpec((1, H), const),              # fc2
        pl.BlockSpec((H, H), const), pl.BlockSpec((1, H), const),              # fc3
        pl.BlockSpec((H, a_pad), const), pl.BlockSpec((1, a_pad), const),      # fc4 (padded)
    ]
    out_specs = (
        pl.BlockSpec((T, Bt, a_pad), lambda b: (0, b, 0)),     # q for all timesteps
        pl.BlockSpec((Bt, H), lambda b: (b, 0)),               # final hidden
    )

    # Advisory cost hint for the XLA scheduler.
    weight_elems = (Din * H + H) + 2 * (H * 3 * H + 3 * H) \
        + 2 * (H * H + H) + (H * a_pad + a_pad)
    flops = 2 * T * B * (Din * H + 2 * H * 3 * H + 2 * H * H + H * a_pad)
    transcendentals = T * B * 3 * H
    bytes_accessed = 4 * (weight_elems + T * B * (Din + a_pad) + 2 * B * H)

    q_pad, h_out = pl.pallas_call(
        _agent_rollout_kernel,
        out_shape=(jax.ShapeDtypeStruct((T, B, a_pad), jnp.float32),
                   jax.ShapeDtypeStruct((B, H), jnp.float32)),
        grid_spec=pltpu.PrefetchScalarGridSpec(
            num_scalar_prefetch=0,
            grid=(nb,),
            in_specs=in_specs,
            out_specs=out_specs,
            scratch_shapes=[pltpu.VMEM((T, Bt, 3 * H), jnp.float32),   # gx staging
                            pltpu.VMEM((T, Bt, H), jnp.float32)],      # all hidden states
        ),
        compiler_params=pltpu.CompilerParams(
            dimension_semantics=("parallel",)),
        cost_estimate=pl.CostEstimate(flops=flops,
                                      transcendentals=transcendentals,
                                      bytes_accessed=bytes_accessed),
    )(inputs_seq, hidden_state,
      fused["w1"], fused["b1"],
      fused["w_ih"], fused["b_ih"],
      fused["w_hh"], fused["b_hh"],
      fused["w2"], fused["b2"],
      fused["w3"], fused["b3"],
      fused["w4p"], fused["b4p"])

    return q_pad[..., :n_actions], h_out


def rnn_agent_forward(inputs, hidden_state, fused):
    """Single-step API matching the PyTorch module: (B, D_in), (B, H) -> (q, h)."""
    q_seq, h = rnn_agent_forward_seq(inputs[None], hidden_state, fused)
    return q_seq[0], h


# ----------------------------------------------------------------------------
# Parameter init + pure-JAX reference (PyTorch GRUCell semantics, use_rnn=True)
# ----------------------------------------------------------------------------
def _uniform(key, shape, bound):
    return jax.random.uniform(key, shape, jnp.float32, -bound, bound)


def init_params(key, input_shape, hidden_dim, n_actions):
    ks = jax.random.split(key, 12)
    b_fc1 = 1.0 / math.sqrt(input_shape)
    b_h = 1.0 / math.sqrt(hidden_dim)
    return {
        "w1": _uniform(ks[0], (input_shape, hidden_dim), b_fc1),
        "b1": _uniform(ks[1], (1, hidden_dim), b_fc1),
        "w_ih": _uniform(ks[2], (hidden_dim, 3 * hidden_dim), b_h),
        "b_ih": _uniform(ks[3], (1, 3 * hidden_dim), b_h),
        "w_hh": _uniform(ks[4], (hidden_dim, 3 * hidden_dim), b_h),
        "b_hh": _uniform(ks[5], (1, 3 * hidden_dim), b_h),
        "w2": _uniform(ks[6], (hidden_dim, hidden_dim), b_h),
        "b2": _uniform(ks[7], (1, hidden_dim), b_h),
        "w3": _uniform(ks[8], (hidden_dim, hidden_dim), b_h),
        "b3": _uniform(ks[9], (1, hidden_dim), b_h),
        "w4": _uniform(ks[10], (hidden_dim, n_actions), b_h),
        "b4": _uniform(ks[11], (1, n_actions), b_h),
    }


def reference_step(inputs, hidden_state, params):
    H = hidden_state.shape[-1]
    x = jnp.maximum(inputs @ params["w1"] + params["b1"], 0.0)
    gx = x @ params["w_ih"] + params["b_ih"]
    gh = hidden_state @ params["w_hh"] + params["b_hh"]
    r = jax.nn.sigmoid(gx[:, :H] + gh[:, :H])
    z = jax.nn.sigmoid(gx[:, H:2 * H] + gh[:, H:2 * H])
    n = jnp.tanh(gx[:, 2 * H:] + r * gh[:, 2 * H:])
    h = (1.0 - z) * n + z * hidden_state
    q = jnp.maximum(h @ params["w2"] + params["b2"], 0.0)
    q = jnp.maximum(q @ params["w3"] + params["b3"], 0.0)
    q = q @ params["w4"] + params["b4"]
    return q, h


def reference_seq(inputs_seq, hidden_state, params):
    qs = []
    h = hidden_state
    for t in range(inputs_seq.shape[0]):
        q, h = reference_step(inputs_seq[t], h, params)
        qs.append(q)
    return jnp.stack(qs, axis=0), h


if __name__ == "__main__":
    T = 8             # rollout length fused into one kernel call
    B = 8             # batch (n_agents * batch_size_run), multiple of 8
    INPUT_SHAPE = 48  # obs + extras
    HIDDEN = 32       # args.hidden_dim
    N_ACTIONS = 16    # args.n_actions

    key = jax.random.PRNGKey(0)
    k_in, k_h, k_p = jax.random.split(key, 3)
    inputs_seq = jax.random.normal(k_in, (T, B, INPUT_SHAPE), jnp.float32)
    hidden = jax.random.normal(k_h, (B, HIDDEN), jnp.float32)
    params = init_params(k_p, INPUT_SHAPE, HIDDEN, N_ACTIONS)
    fused = prepare_fused_params(params)

    # Fused multi-timestep path (main optimized path).
    q_seq, h_final = rnn_agent_forward_seq(inputs_seq, hidden, fused)
    q_seq = jax.block_until_ready(q_seq)
    h_final = jax.block_until_ready(h_final)

    q_seq_ref, h_final_ref = reference_seq(inputs_seq, hidden, params)
    assert q_seq.shape == (T, B, N_ACTIONS) and h_final.shape == (B, HIDDEN)
    assert jnp.allclose(q_seq, q_seq_ref, atol=1e-5, rtol=1e-5)
    assert jnp.allclose(h_final, h_final_ref, atol=1e-5, rtol=1e-5)

    # Single-step path (matches the PyTorch module's forward signature).
    q1, h1 = rnn_agent_forward(inputs_seq[0], hidden, fused)
    q1 = jax.block_until_ready(q1)
    q1_ref, h1_ref = reference_step(inputs_seq[0], hidden, params)
    assert jnp.allclose(q1, q1_ref, atol=1e-5, rtol=1e-5)
    assert jnp.allclose(h1, h1_ref, atol=1e-5, rtol=1e-5)

    print("KERNEL_OK")
</pallas_src>

<mosaic_0001>
module attributes {stable_mosaic.version = 11 : i64} {
  func.func @_agent_rollout_kernel(%arg0: i32, %arg1: memref<8x8x48xf32, #tpu.memory_space<vmem>>, %arg2: memref<8x32xf32, #tpu.memory_space<vmem>>, %arg3: memref<48x32xf32, #tpu.memory_space<vmem>>, %arg4: memref<1x32xf32, #tpu.memory_space<vmem>>, %arg5: memref<32x96xf32, #tpu.memory_space<vmem>>, %arg6: memref<1x96xf32, #tpu.memory_space<vmem>>, %arg7: memref<32x96xf32, #tpu.memory_space<vmem>>, %arg8: memref<1x96xf32, #tpu.memory_space<vmem>>, %arg9: memref<32x32xf32, #tpu.memory_space<vmem>>, %arg10: memref<1x32xf32, #tpu.memory_space<vmem>>, %arg11: memref<32x32xf32, #tpu.memory_space<vmem>>, %arg12: memref<1x32xf32, #tpu.memory_space<vmem>>, %arg13: memref<32x128xf32, #tpu.memory_space<vmem>>, %arg14: memref<1x128xf32, #tpu.memory_space<vmem>>, %arg15: memref<8x8x128xf32, #tpu.memory_space<vmem>>, %arg16: memref<8x32xf32, #tpu.memory_space<vmem>>, %arg17: memref<8x8x96xf32, #tpu.memory_space<vmem>>, %arg18: memref<8x8x32xf32, #tpu.memory_space<vmem>>) attributes {dimension_semantics = [#tpu.dimension_semantics<parallel>], iteration_bounds = array<i64: 1>, scalar_prefetch = 0 : i64, scratch_operands = 2 : i64, tpu.core_type = #tpu.core_type<tc>, window_params = [{transform_indices = @transform_0, window_bounds = array<i64: 8, 8, 48>}, {transform_indices = @transform_1, window_bounds = array<i64: 8, 32>}, {pipeline_mode = #tpu.pipeline_mode<synchronous>, transform_indices = @transform_2, window_bounds = array<i64: 48, 32>}, {pipeline_mode = #tpu.pipeline_mode<synchronous>, transform_indices = @transform_3, window_bounds = array<i64: 1, 32>}, {pipeline_mode = #tpu.pipeline_mode<synchronous>, transform_indices = @transform_4, window_bounds = array<i64: 32, 96>}, {pipeline_mode = #tpu.pipeline_mode<synchronous>, transform_indices = @transform_5, window_bounds = array<i64: 1, 96>}, {pipeline_mode = #tpu.pipeline_mode<synchronous>, transform_indices = @transform_6, window_bounds = array<i64: 32, 96>}, {pipeline_mode = #tpu.pipeline_mode<synchronous>, transform_indices = @transform_7, window_bounds = array<i64: 1, 96>}, {pipeline_mode = #tpu.pipeline_mode<synchronous>, transform_indices = @transform_8, window_bounds = array<i64: 32, 32>}, {pipeline_mode = #tpu.pipeline_mode<synchronous>, transform_indices = @transform_9, window_bounds = array<i64: 1, 32>}, {pipeline_mode = #tpu.pipeline_mode<synchronous>, transform_indices = @transform_10, window_bounds = array<i64: 32, 32>}, {pipeline_mode = #tpu.pipeline_mode<synchronous>, transform_indices = @transform_11, window_bounds = array<i64: 1, 32>}, {pipeline_mode = #tpu.pipeline_mode<synchronous>, transform_indices = @transform_12, window_bounds = array<i64: 32, 128>}, {pipeline_mode = #tpu.pipeline_mode<synchronous>, transform_indices = @transform_13, window_bounds = array<i64: 1, 128>}, {transform_indices = @transform_14, window_bounds = array<i64: 8, 8, 128>}, {transform_indices = @transform_15, window_bounds = array<i64: 8, 32>}]} {
    %c0 = arith.constant 0 : index
    %c0_0 = arith.constant 0 : index
    %c0_1 = arith.constant 0 : index
    %0 = vector.load %arg1[%c0, %c0_0, %c0_1] : memref<8x8x48xf32, #tpu.memory_space<vmem>>, vector<8x8x48xf32>
    %1 = vector.shape_cast %0 : vector<8x8x48xf32> to vector<64x48xf32>
    %c0_2 = arith.constant 0 : index
    %c0_3 = arith.constant 0 : index
    %2 = vector.load %arg3[%c0_2, %c0_3] : memref<48x32xf32, #tpu.memory_space<vmem>>, vector<48x32xf32>
    %cst = arith.constant dense<0.000000e+00> : vector<64x32xf32>
    %3 = tpu.matmul %1, %2, %cst {dimension_numbers = #tpu.dot_dimension_numbers<[1], [0], [0], [1], [0, 0, 1, 1], [], []>} : vector<64x48xf32>, vector<48x32xf32>, vector<64x32xf32> -> vector<64x32xf32>
    %c0_4 = arith.constant 0 : index
    %c0_5 = arith.constant 0 : index
    %4 = vector.load %arg4[%c0_4, %c0_5] : memref<1x32xf32, #tpu.memory_space<vmem>>, vector<1x32xf32>
    %5 = vector.broadcast %4 : vector<1x32xf32> to vector<64x32xf32>
    %6 = arith.addf %3, %5 : vector<64x32xf32>
    %cst_6 = arith.constant 0.000000e+00 : f32
    %7 = vector.broadcast %cst_6 : f32 to vector<64x32xf32>
    %8 = arith.maximumf %6, %7 : vector<64x32xf32>
    %c0_7 = arith.constant 0 : index
    %c0_8 = arith.constant 0 : index
    %9 = vector.load %arg5[%c0_7, %c0_8] : memref<32x96xf32, #tpu.memory_space<vmem>>, vector<32x96xf32>
    %cst_9 = arith.constant dense<0.000000e+00> : vector<64x96xf32>
    %10 = tpu.matmul %8, %9, %cst_9 {dimension_numbers = #tpu.dot_dimension_numbers<[1], [0], [0], [1], [0, 0, 1, 1], [], []>} : vector<64x32xf32>, vector<32x96xf32>, vector<64x96xf32> -> vector<64x96xf32>
    %c0_10 = arith.constant 0 : index
    %c0_11 = arith.constant 0 : index
    %11 = vector.load %arg6[%c0_10, %c0_11] : memref<1x96xf32, #tpu.memory_space<vmem>>, vector<1x96xf32>
    %12 = vector.broadcast %11 : vector<1x96xf32> to vector<64x96xf32>
    %13 = arith.addf %10, %12 : vector<64x96xf32>
    %14 = vector.shape_cast %13 : vector<64x96xf32> to vector<8x8x96xf32>
    %c0_12 = arith.constant 0 : index
    %c0_13 = arith.constant 0 : index
    %c0_14 = arith.constant 0 : index
    %15 = vector.load %arg17[%c0_12, %c0_13, %c0_14] : memref<8x8x96xf32, #tpu.memory_space<vmem>>, vector<8x8x96xf32>
    tpu.vector_store %arg17[%c0_12, %c0_13, %c0_14], %14 {strides = array<i32>} : memref<8x8x96xf32, #tpu.memory_space<vmem>>, vector<8x8x96xf32>,
    %c0_15 = arith.constant 0 : index
    %c0_16 = arith.constant 0 : index
    %16 = vector.load %arg2[%c0_15, %c0_16] : memref<8x32xf32, #tpu.memory_space<vmem>>, vector<8x32xf32>
    %c0_i32 = arith.constant 0 : i32
    %17 = arith.index_cast %c0_i32 : i32 to index
    %c0_17 = arith.constant 0 : index
    %c0_18 = arith.constant 0 : index
    %18 = vector.load %arg17[%17, %c0_17, %c0_18] : memref<8x8x96xf32, #tpu.memory_space<vmem>>, vector<1x8x96xf32>
    %19 = vector.shape_cast %18 : vector<1x8x96xf32> to vector<8x96xf32>
    %c0_19 = arith.constant 0 : index
    %c0_20 = arith.constant 0 : index
    %20 = vector.load %arg7[%c0_19, %c0_20] : memref<32x96xf32, #tpu.memory_space<vmem>>, vector<32x96xf32>
    %cst_21 = arith.constant dense<0.000000e+00> : vector<8x96xf32>
    %21 = tpu.matmul %16, %20, %cst_21 {dimension_numbers = #tpu.dot_dimension_numbers<[1], [0], [0], [1], [0, 0, 1, 1], [], []>} : vector<8x32xf32>, vector<32x96xf32>, vector<8x96xf32> -> vector<8x96xf32>
    %c0_22 = arith.constant 0 : index
    %c0_23 = arith.constant 0 : index
    %22 = vector.load %arg8[%c0_22, %c0_23] : memref<1x96xf32, #tpu.memory_space<vmem>>, vector<1x96xf32>
    %23 = vector.broadcast %22 : vector<1x96xf32> to vector<8x96xf32>
    %24 = arith.addf %21, %23 : vector<8x96xf32>
    %25 = vector.extract_strided_slice %19 {offsets = [0, 0], sizes = [8, 64], strides = [1, 1]} : vector<8x96xf32> to vector<8x64xf32>
    %26 = vector.extract_strided_slice %24 {offsets = [0, 0], sizes = [8, 64], strides = [1, 1]} : vector<8x96xf32> to vector<8x64xf32>
    %27 = arith.addf %25, %26 : vector<8x64xf32>
    %28 = arith.negf %27 : vector<8x64xf32>
    %29 = math.exp %28 : vector<8x64xf32>
    %cst_24 = arith.constant 1.000000e+00 : f32
    %30 = vector.broadcast %cst_24 : f32 to vector<8x64xf32>
    %31 = arith.addf %30, %29 : vector<8x64xf32>
    %32 = arith.divf %30, %31 : vector<8x64xf32>
    %33 = vector.extract_strided_slice %32 {offsets = [0, 0], sizes = [8, 32], strides = [1, 1]} : vector<8x64xf32> to vector<8x32xf32>
    %34 = vector.extract_strided_slice %32 {offsets = [0, 32], sizes = [8, 32], strides = [1, 1]} : vector<8x64xf32> to vector<8x32xf32>
    %35 = vector.extract_strided_slice %19 {offsets = [0, 64], sizes = [8, 32], strides = [1, 1]} : vector<8x96xf32> to vector<8x32xf32>
    %36 = vector.extract_strided_slice %24 {offsets = [0, 64], sizes = [8, 32], strides = [1, 1]} : vector<8x96xf32> to vector<8x32xf32>
    %37 = arith.mulf %33, %36 : vector<8x32xf32>
    %38 = arith.addf %35, %37 : vector<8x32xf32>
    %39 = math.tanh %38 : vector<8x32xf32>
    %cst_25 = arith.constant 1.000000e+00 : f32
    %40 = vector.broadcast %cst_25 : f32 to vector<8x32xf32>
    %41 = arith.subf %40, %34 : vector<8x32xf32>
    %42 = arith.mulf %41, %39 : vector<8x32xf32>
    %43 = arith.mulf %34, %16 : vector<8x32xf32>
    %44 = arith.addf %42, %43 : vector<8x32xf32>
    %45 = arith.index_cast %c0_i32 : i32 to index
    %c0_26 = arith.constant 0 : index
    %c0_27 = arith.constant 0 : index
    %46 = vector.load %arg18[%45, %c0_26, %c0_27] : memref<8x8x32xf32, #tpu.memory_space<vmem>>, vector<1x8x32xf32>
    %47 = vector.shape_cast %46 : vector<1x8x32xf32> to vector<8x32xf32>
    %48 = vector.shape_cast %44 : vector<8x32xf32> to vector<1x8x32xf32>
    tpu.vector_store %arg18[%45, %c0_26, %c0_27], %48 {strides = array<i32>} : memref<8x8x32xf32, #tpu.memory_space<vmem>>, vector<1x8x32xf32>,
    %c1_i32 = arith.constant 1 : i32
    %49 = arith.index_cast %c1_i32 : i32 to index
    %c0_28 = arith.constant 0 : index
    %c0_29 = arith.constant 0 : index
    %50 = vector.load %arg17[%49, %c0_28, %c0_29] : memref<8x8x96xf32, #tpu.memory_space<vmem>>, vector<1x8x96xf32>
    %51 = vector.shape_cast %50 : vector<1x8x96xf32> to vector<8x96xf32>
    %c0_30 = arith.constant 0 : index
    %c0_31 = arith.constant 0 : index
    %52 = vector.load %arg7[%c0_30, %c0_31] : memref<32x96xf32, #tpu.memory_space<vmem>>, vector<32x96xf32>
    %cst_32 = arith.constant dense<0.000000e+00> : vector<8x96xf32>
    %53 = tpu.matmul %44, %52, %cst_32 {dimension_numbers = #tpu.dot_dimension_numbers<[1], [0], [0], [1], [0, 0, 1, 1], [], []>} : vector<8x32xf32>, vector<32x96xf32>, vector<8x96xf32> -> vector<8x96xf32>
    %c0_33 = arith.constant 0 : index
    %c0_34 = arith.constant 0 : index
    %54 = vector.load %arg8[%c0_33, %c0_34] : memref<1x96xf32, #tpu.memory_space<vmem>>, vector<1x96xf32>
    %55 = vector.broadcast %54 : vector<1x96xf32> to vector<8x96xf32>
    %56 = arith.addf %53, %55 : vector<8x96xf32>
    %57 = vector.extract_strided_slice %51 {offsets = [0, 0], sizes = [8, 64], strides = [1, 1]} : vector<8x96xf32> to vector<8x64xf32>
    %58 = vector.extract_strided_slice %56 {offsets = [0, 0], sizes = [8, 64], strides = [1, 1]} : vector<8x96xf32> to vector<8x64xf32>
    %59 = arith.addf %57, %58 : vector<8x64xf32>
    %60 = arith.negf %59 : vector<8x64xf32>
    %61 = math.exp %60 : vector<8x64xf32>
    %cst_35 = arith.constant 1.000000e+00 : f32
    %62 = vector.broadcast %cst_35 : f32 to vector<8x64xf32>
    %63 = arith.addf %62, %61 : vector<8x64xf32>
    %64 = arith.divf %62, %63 : vector<8x64xf32>
    %65 = vector.extract_strided_slice %64 {offsets = [0, 0], sizes = [8, 32], strides = [1, 1]} : vector<8x64xf32> to vector<8x32xf32>
    %66 = vector.extract_strided_slice %64 {offsets = [0, 32], sizes = [8, 32], strides = [1, 1]} : vector<8x64xf32> to vector<8x32xf32>
    %67 = vector.extract_strided_slice %51 {offsets = [0, 64], sizes = [8, 32], strides = [1, 1]} : vector<8x96xf32> to vector<8x32xf32>
    %68 = vector.extract_strided_slice %56 {offsets = [0, 64], sizes = [8, 32], strides = [1, 1]} : vector<8x96xf32> to vector<8x32xf32>
    %69 = arith.mulf %65, %68 : vector<8x32xf32>
    %70 = arith.addf %67, %69 : vector<8x32xf32>
    %71 = math.tanh %70 : vector<8x32xf32>
    %cst_36 = arith.constant 1.000000e+00 : f32
    %72 = vector.broadcast %cst_36 : f32 to vector<8x32xf32>
    %73 = arith.subf %72, %66 : vector<8x32xf32>
    %74 = arith.mulf %73, %71 : vector<8x32xf32>
    %75 = arith.mulf %66, %44 : vector<8x32xf32>
    %76 = arith.addf %74, %75 : vector<8x32xf32>
    %77 = arith.index_cast %c1_i32 : i32 to index
    %c0_37 = arith.constant 0 : index
    %c0_38 = arith.constant 0 : index
    %78 = vector.load %arg18[%77, %c0_37, %c0_38] : memref<8x8x32xf32, #tpu.memory_space<vmem>>, vector<1x8x32xf32>
    %79 = vector.shape_cast %78 : vector<1x8x32xf32> to vector<8x32xf32>
    %80 = vector.shape_cast %76 : vector<8x32xf32> to vector<1x8x32xf32>
    tpu.vector_store %arg18[%77, %c0_37, %c0_38], %80 {strides = array<i32>} : memref<8x8x32xf32, #tpu.memory_space<vmem>>, vector<1x8x32xf32>,
    %c2_i32 = arith.constant 2 : i32
    %81 = arith.index_cast %c2_i32 : i32 to index
    %c0_39 = arith.constant 0 : index
    %c0_40 = arith.constant 0 : index
    %82 = vector.load %arg17[%81, %c0_39, %c0_40] : memref<8x8x96xf32, #tpu.memory_space<vmem>>, vector<1x8x96xf32>
    %83 = vector.shape_cast %82 : vector<1x8x96xf32> to vector<8x96xf32>
    %c0_41 = arith.constant 0 : index
    %c0_42 = arith.constant 0 : index
    %84 = vector.load %arg7[%c0_41, %c0_42] : memref<32x96xf32, #tpu.memory_space<vmem>>, vector<32x96xf32>
    %cst_43 = arith.constant dense<0.000000e+00> : vector<8x96xf32>
    %85 = tpu.matmul %76, %84, %cst_43 {dimension_numbers = #tpu.dot_dimension_numbers<[1], [0], [0], [1], [0, 0, 1, 1], [], []>} : vector<8x32xf32>, vector<32x96xf32>, vector<8x96xf32> -> vector<8x96xf32>
    %c0_44 = arith.constant 0 : index
    %c0_45 = arith.constant 0 : index
    %86 = vector.load %arg8[%c0_44, %c0_45] : memref<1x96xf32, #tpu.memory_space<vmem>>, vector<1x96xf32>
    %87 = vector.broadcast %86 : vector<1x96xf32> to vector<8x96xf32>
    %88 = arith.addf %85, %87 : vector<8x96xf32>
    %89 = vector.extract_strided_slice %83 {offsets = [0, 0], sizes = [8, 64], strides = [1, 1]} : vector<8x96xf32> to vector<8x64xf32>
    %90 = vector.extract_strided_slice %88 {offsets = [0, 0], sizes = [8, 64], strides = [1, 1]} : vector<8x96xf32> to vector<8x64xf32>
    %91 = arith.addf %89, %90 : vector<8x64xf32>
    %92 = arith.negf %91 : vector<8x64xf32>
    %93 = math.exp %92 : vector<8x64xf32>
    %cst_46 = arith.constant 1.000000e+00 : f32
    %94 = vector.broadcast %cst_46 : f32 to vector<8x64xf32>
    %95 = arith.addf %94, %93 : vector<8x64xf32>
    %96 = arith.divf %94, %95 : vector<8x64xf32>
    %97 = vector.extract_strided_slice %96 {offsets = [0, 0], sizes = [8, 32], strides = [1, 1]} : vector<8x64xf32> to vector<8x32xf32>
    %98 = vector.extract_strided_slice %96 {offsets = [0, 32], sizes = [8, 32], strides = [1, 1]} : vector<8x64xf32> to vector<8x32xf32>
    %99 = vector.extract_strided_slice %83 {offsets = [0, 64], sizes = [8, 32], strides = [1, 1]} : vector<8x96xf32> to vector<8x32xf32>
    %100 = vector.extract_strided_slice %88 {offsets = [0, 64], sizes = [8, 32], strides = [1, 1]} : vector<8x96xf32> to vector<8x32xf32>
    %101 = arith.mulf %97, %100 : vector<8x32xf32>
    %102 = arith.addf %99, %101 : vector<8x32xf32>
    %103 = math.tanh %102 : vector<8x32xf32>
    %cst_47 = arith.constant 1.000000e+00 : f32
    %104 = vector.broadcast %cst_47 : f32 to vector<8x32xf32>
    %105 = arith.subf %104, %98 : vector<8x32xf32>
    %106 = arith.mulf %105, %103 : vector<8x32xf32>
    %107 = arith.mulf %98, %76 : vector<8x32xf32>
    %108 = arith.addf %106, %107 : vector<8x32xf32>
    %109 = arith.index_cast %c2_i32 : i32 to index
    %c0_48 = arith.constant 0 : index
    %c0_49 = arith.constant 0 : index
    %110 = vector.load %arg18[%109, %c0_48, %c0_49] : memref<8x8x32xf32, #tpu.memory_space<vmem>>, vector<1x8x32xf32>
    %111 = vector.shape_cast %110 : vector<1x8x32xf32> to vector<8x32xf32>
    %112 = vector.shape_cast %108 : vector<8x32xf32> to vector<1x8x32xf32>
    tpu.vector_store %arg18[%109, %c0_48, %c0_49], %112 {strides = array<i32>} : memref<8x8x32xf32, #tpu.memory_space<vmem>>, vector<1x8x32xf32>,
    %c3_i32 = arith.constant 3 : i32
    %113 = arith.index_cast %c3_i32 : i32 to index
    %c0_50 = arith.constant 0 : index
    %c0_51 = arith.constant 0 : index
    %114 = vector.load %arg17[%113, %c0_50, %c0_51] : memref<8x8x96xf32, #tpu.memory_space<vmem>>, vector<1x8x96xf32>
    %115 = vector.shape_cast %114 : vector<1x8x96xf32> to vector<8x96xf32>
    %c0_52 = arith.constant 0 : index
    %c0_53 = arith.constant 0 : index
    %116 = vector.load %arg7[%c0_52, %c0_53] : memref<32x96xf32, #tpu.memory_space<vmem>>, vector<32x96xf32>
    %cst_54 = arith.constant dense<0.000000e+00> : vector<8x96xf32>
    %117 = tpu.matmul %108, %116, %cst_54 {dimension_numbers = #tpu.dot_dimension_numbers<[1], [0], [0], [1], [0, 0, 1, 1], [], []>} : vector<8x32xf32>, vector<32x96xf32>, vector<8x96xf32> -> vector<8x96xf32>
    %c0_55 = arith.constant 0 : index
    %c0_56 = arith.constant 0 : index
    %118 = vector.load %arg8[%c0_55, %c0_56] : memref<1x96xf32, #tpu.memory_space<vmem>>, vector<1x96xf32>
    %119 = vector.broadcast %118 : vector<1x96xf32> to vector<8x96xf32>
    %120 = arith.addf %117, %119 : vector<8x96xf32>
    %121 = vector.extract_strided_slice %115 {offsets = [0, 0], sizes = [8, 64], strides = [1, 1]} : vector<8x96xf32> to vector<8x64xf32>
    %122 = vector.extract_strided_slice %120 {offsets = [0, 0], sizes = [8, 64], strides = [1, 1]} : vector<8x96xf32> to vector<8x64xf32>
    %123 = arith.addf %121, %122 : vector<8x64xf32>
    %124 = arith.negf %123 : vector<8x64xf32>
    %125 = math.exp %124 : vector<8x64xf32>
    %cst_57 = arith.constant 1.000000e+00 : f32
    %126 = vector.broadcast %cst_57 : f32 to vector<8x64xf32>
    %127 = arith.addf %126, %125 : vector<8x64xf32>
    %128 = arith.divf %126, %127 : vector<8x64xf32>
    %129 = vector.extract_strided_slice %128 {offsets = [0, 0], sizes = [8, 32], strides = [1, 1]} : vector<8x64xf32> to vector<8x32xf32>
    %130 = vector.extract_strided_slice %128 {offsets = [0, 32], sizes = [8, 32], strides = [1, 1]} : vector<8x64xf32> to vector<8x32xf32>
    %131 = vector.extract_strided_slice %115 {offsets = [0, 64], sizes = [8, 32], strides = [1, 1]} : vector<8x96xf32> to vector<8x32xf32>
    %132 = vector.extract_strided_slice %120 {offsets = [0, 64], sizes = [8, 32], strides = [1, 1]} : vector<8x96xf32> to vector<8x32xf32>
    %133 = arith.mulf %129, %132 : vector<8x32xf32>
    %134 = arith.addf %131, %133 : vector<8x32xf32>
    %135 = math.tanh %134 : vector<8x32xf32>
    %cst_58 = arith.constant 1.000000e+00 : f32
    %136 = vector.broadcast %cst_58 : f32 to vector<8x32xf32>
    %137 = arith.subf %136, %130 : vector<8x32xf32>
    %138 = arith.mulf %137, %135 : vector<8x32xf32>
    %139 = arith.mulf %130, %108 : vector<8x32xf32>
    %140 = arith.addf %138, %139 : vector<8x32xf32>
    %141 = arith.index_cast %c3_i32 : i32 to index
    %c0_59 = arith.constant 0 : index
    %c0_60 = arith.constant 0 : index
    %142 = vector.load %arg18[%141, %c0_59, %c0_60] : memref<8x8x32xf32, #tpu.memory_space<vmem>>, vector<1x8x32xf32>
    %143 = vector.shape_cast %142 : vector<1x8x32xf32> to vector<8x32xf32>
    %144 = vector.shape_cast %140 : vector<8x32xf32> to vector<1x8x32xf32>
    tpu.vector_store %arg18[%141, %c0_59, %c0_60], %144 {strides = array<i32>} : memref<8x8x32xf32, #tpu.memory_space<vmem>>, vector<1x8x32xf32>,
    %c4_i32 = arith.constant 4 : i32
    %145 = arith.index_cast %c4_i32 : i32 to index
    %c0_61 = arith.constant 0 : index
    %c0_62 = arith.constant 0 : index
    %146 = vector.load %arg17[%145, %c0_61, %c0_62] : memref<8x8x96xf32, #tpu.memory_space<vmem>>, vector<1x8x96xf32>
    %147 = vector.shape_cast %146 : vector<1x8x96xf32> to vector<8x96xf32>
    %c0_63 = arith.constant 0 : index
    %c0_64 = arith.constant 0 : index
    %148 = vector.load %arg7[%c0_63, %c0_64] : memref<32x96xf32, #tpu.memory_space<vmem>>, vector<32x96xf32>
    %cst_65 = arith.constant dense<0.000000e+00> : vector<8x96xf32>
    %149 = tpu.matmul %140, %148, %cst_65 {dimension_numbers = #tpu.dot_dimension_numbers<[1], [0], [0], [1], [0, 0, 1, 1], [], []>} : vector<8x32xf32>, vector<32x96xf32>, vector<8x96xf32> -> vector<8x96xf32>
    %c0_66 = arith.constant 0 : index
    %c0_67 = arith.constant 0 : index
    %150 = vector.load %arg8[%c0_66, %c0_67] : memref<1x96xf32, #tpu.memory_space<vmem>>, vector<1x96xf32>
    %151 = vector.broadcast %150 : vector<1x96xf32> to vector<8x96xf32>
    %152 = arith.addf %149, %151 : vector<8x96xf32>
    %153 = vector.extract_strided_slice %147 {offsets = [0, 0], sizes = [8, 64], strides = [1, 1]} : vector<8x96xf32> to vector<8x64xf32>
    %154 = vector.extract_strided_slice %152 {offsets = [0, 0], sizes = [8, 64], strides = [1, 1]} : vector<8x96xf32> to vector<8x64xf32>
    %155 = arith.addf %153, %154 : vector<8x64xf32>
    %156 = arith.negf %155 : vector<8x64xf32>
    %157 = math.exp %156 : vector<8x64xf32>
    %cst_68 = arith.constant 1.000000e+00 : f32
    %158 = vector.broadcast %cst_68 : f32 to vector<8x64xf32>
    %159 = arith.addf %158, %157 : vector<8x64xf32>
    %160 = arith.divf %158, %159 : vector<8x64xf32>
    %161 = vector.extract_strided_slice %160 {offsets = [0, 0], sizes = [8, 32], strides = [1, 1]} : vector<8x64xf32> to vector<8x32xf32>
    %162 = vector.extract_strided_slice %160 {offsets = [0, 32], sizes = [8, 32], strides = [1, 1]} : vector<8x64xf32> to vector<8x32xf32>
    %163 = vector.extract_strided_slice %147 {offsets = [0, 64], sizes = [8, 32], strides = [1, 1]} : vector<8x96xf32> to vector<8x32xf32>
    %164 = vector.extract_strided_slice %152 {offsets = [0, 64], sizes = [8, 32], strides = [1, 1]} : vector<8x96xf32> to vector<8x32xf32>
    %165 = arith.mulf %161, %164 : vector<8x32xf32>
    %166 = arith.addf %163, %165 : vector<8x32xf32>
    %167 = math.tanh %166 : vector<8x32xf32>
    %cst_69 = arith.constant 1.000000e+00 : f32
    %168 = vector.broadcast %cst_69 : f32 to vector<8x32xf32>
    %169 = arith.subf %168, %162 : vector<8x32xf32>
    %170 = arith.mulf %169, %167 : vector<8x32xf32>
    %171 = arith.mulf %162, %140 : vector<8x32xf32>
    %172 = arith.addf %170, %171 : vector<8x32xf32>
    %173 = arith.index_cast %c4_i32 : i32 to index
    %c0_70 = arith.constant 0 : index
    %c0_71 = arith.constant 0 : index
    %174 = vector.load %arg18[%173, %c0_70, %c0_71] : memref<8x8x32xf32, #tpu.memory_space<vmem>>, vector<1x8x32xf32>
    %175 = vector.shape_cast %174 : vector<1x8x32xf32> to vector<8x32xf32>
    %176 = vector.shape_cast %172 : vector<8x32xf32> to vector<1x8x32xf32>
    tpu.vector_store %arg18[%173, %c0_70, %c0_71], %176 {strides = array<i32>} : memref<8x8x32xf32, #tpu.memory_space<vmem>>, vector<1x8x32xf32>,
    %c5_i32 = arith.constant 5 : i32
    %177 = arith.index_cast %c5_i32 : i32 to index
    %c0_72 = arith.constant 0 : index
    %c0_73 = arith.constant 0 : index
    %178 = vector.load %arg17[%177, %c0_72, %c0_73] : memref<8x8x96xf32, #tpu.memory_space<vmem>>, vector<1x8x96xf32>
    %179 = vector.shape_cast %178 : vector<1x8x96xf32> to vector<8x96xf32>
    %c0_74 = arith.constant 0 : index
    %c0_75 = arith.constant 0 : index
    %180 = vector.load %arg7[%c0_74, %c0_75] : memref<32x96xf32, #tpu.memory_space<vmem>>, vector<32x96xf32>
    %cst_76 = arith.constant dense<0.000000e+00> : vector<8x96xf32>
    %181 = tpu.matmul %172, %180, %cst_76 {dimension_numbers = #tpu.dot_dimension_numbers<[1], [0], [0], [1], [0, 0, 1, 1], [], []>} : vector<8x32xf32>, vector<32x96xf32>, vector<8x96xf32> -> vector<8x96xf32>
    %c0_77 = arith.constant 0 : index
    %c0_78 = arith.constant 0 : index
    %182 = vector.load %arg8[%c0_77, %c0_78] : memref<1x96xf32, #tpu.memory_space<vmem>>, vector<1x96xf32>
    %183 = vector.broadcast %182 : vector<1x96xf32> to vector<8x96xf32>
    %184 = arith.addf %181, %183 : vector<8x96xf32>
    %185 = vector.extract_strided_slice %179 {offsets = [0, 0], sizes = [8, 64], strides = [1, 1]} : vector<8x96xf32> to vector<8x64xf32>
    %186 = vector.extract_strided_slice %184 {offsets = [0, 0], sizes = [8, 64], strides = [1, 1]} : vector<8x96xf32> to vector<8x64xf32>
    %187 = arith.addf %185, %186 : vector<8x64xf32>
    %188 = arith.negf %187 : vector<8x64xf32>
    %189 = math.exp %188 : vector<8x64xf32>
    %cst_79 = arith.constant 1.000000e+00 : f32
    %190 = vector.broadcast %cst_79 : f32 to vector<8x64xf32>
    %191 = arith.addf %190, %189 : vector<8x64xf32>
    %192 = arith.divf %190, %191 : vector<8x64xf32>
    %193 = vector.extract_strided_slice %192 {offsets = [0, 0], sizes = [8, 32], strides = [1, 1]} : vector<8x64xf32> to vector<8x32xf32>
    %194 = vector.extract_strided_slice %192 {offsets = [0, 32], sizes = [8, 32], strides = [1, 1]} : vector<8x64xf32> to vector<8x32xf32>
    %195 = vector.extract_strided_slice %179 {offsets = [0, 64], sizes = [8, 32], strides = [1, 1]} : vector<8x96xf32> to vector<8x32xf32>
    %196 = vector.extract_strided_slice %184 {offsets = [0, 64], sizes = [8, 32], strides = [1, 1]} : vector<8x96xf32> to vector<8x32xf32>
    %197 = arith.mulf %193, %196 : vector<8x32xf32>
    %198 = arith.addf %195, %197 : vector<8x32xf32>
    %199 = math.tanh %198 : vector<8x32xf32>
    %cst_80 = arith.constant 1.000000e+00 : f32
    %200 = vector.broadcast %cst_80 : f32 to vector<8x32xf32>
    %201 = arith.subf %200, %194 : vector<8x32xf32>
    %202 = arith.mulf %201, %199 : vector<8x32xf32>
    %203 = arith.mulf %194, %172 : vector<8x32xf32>
    %204 = arith.addf %202, %203 : vector<8x32xf32>
    %205 = arith.index_cast %c5_i32 : i32 to index
    %c0_81 = arith.constant 0 : index
    %c0_82 = arith.constant 0 : index
    %206 = vector.load %arg18[%205, %c0_81, %c0_82] : memref<8x8x32xf32, #tpu.memory_space<vmem>>, vector<1x8x32xf32>
    %207 = vector.shape_cast %206 : vector<1x8x32xf32> to vector<8x32xf32>
    %208 = vector.shape_cast %204 : vector<8x32xf32> to vector<1x8x32xf32>
    tpu.vector_store %arg18[%205, %c0_81, %c0_82], %208 {strides = array<i32>} : memref<8x8x32xf32, #tpu.memory_space<vmem>>, vector<1x8x32xf32>,
    %c6_i32 = arith.constant 6 : i32
    %209 = arith.index_cast %c6_i32 : i32 to index
    %c0_83 = arith.constant 0 : index
    %c0_84 = arith.constant 0 : index
    %210 = vector.load %arg17[%209, %c0_83, %c0_84] : memref<8x8x96xf32, #tpu.memory_space<vmem>>, vector<1x8x96xf32>
    %211 = vector.shape_cast %210 : vector<1x8x96xf32> to vector<8x96xf32>
    %c0_85 = arith.constant 0 : index
    %c0_86 = arith.constant 0 : index
    %212 = vector.load %arg7[%c0_85, %c0_86] : memref<32x96xf32, #tpu.memory_space<vmem>>, vector<32x96xf32>
    %cst_87 = arith.constant dense<0.000000e+00> : vector<8x96xf32>
    %213 = tpu.matmul %204, %212, %cst_87 {dimension_numbers = #tpu.dot_dimension_numbers<[1], [0], [0], [1], [0, 0, 1, 1], [], []>} : vector<8x32xf32>, vector<32x96xf32>, vector<8x96xf32> -> vector<8x96xf32>
    %c0_88 = arith.constant 0 : index
    %c0_89 = arith.constant 0 : index
    %214 = vector.load %arg8[%c0_88, %c0_89] : memref<1x96xf32, #tpu.memory_space<vmem>>, vector<1x96xf32>
    %215 = vector.broadcast %214 : vector<1x96xf32> to vector<8x96xf32>
    %216 = arith.addf %213, %215 : vector<8x96xf32>
    %217 = vector.extract_strided_slice %211 {offsets = [0, 0], sizes = [8, 64], strides = [1, 1]} : vector<8x96xf32> to vector<8x64xf32>
    %218 = vector.extract_strided_slice %216 {offsets = [0, 0], sizes = [8, 64], strides = [1, 1]} : vector<8x96xf32> to vector<8x64xf32>
    %219 = arith.addf %217, %218 : vector<8x64xf32>
    %220 = arith.negf %219 : vector<8x64xf32>
    %221 = math.exp %220 : vector<8x64xf32>
    %cst_90 = arith.constant 1.000000e+00 : f32
    %222 = vector.broadcast %cst_90 : f32 to vector<8x64xf32>
    %223 = arith.addf %222, %221 : vector<8x64xf32>
    %224 = arith.divf %222, %223 : vector<8x64xf32>
    %225 = vector.extract_strided_slice %224 {offsets = [0, 0], sizes = [8, 32], strides = [1, 1]} : vector<8x64xf32> to vector<8x32xf32>
    %226 = vector.extract_strided_slice %224 {offsets = [0, 32], sizes = [8, 32], strides = [1, 1]} : vector<8x64xf32> to vector<8x32xf32>
    %227 = vector.extract_strided_slice %211 {offsets = [0, 64], sizes = [8, 32], strides = [1, 1]} : vector<8x96xf32> to vector<8x32xf32>
    %228 = vector.extract_strided_slice %216 {offsets = [0, 64], sizes = [8, 32], strides = [1, 1]} : vector<8x96xf32> to vector<8x32xf32>
    %229 = arith.mulf %225, %228 : vector<8x32xf32>
    %230 = arith.addf %227, %229 : vector<8x32xf32>
    %231 = math.tanh %230 : vector<8x32xf32>
    %cst_91 = arith.constant 1.000000e+00 : f32
    %232 = vector.broadcast %cst_91 : f32 to vector<8x32xf32>
    %233 = arith.subf %232, %226 : vector<8x32xf32>
    %234 = arith.mulf %233, %231 : vector<8x32xf32>
    %235 = arith.mulf %226, %204 : vector<8x32xf32>
    %236 = arith.addf %234, %235 : vector<8x32xf32>
    %237 = arith.index_cast %c6_i32 : i32 to index
    %c0_92 = arith.constant 0 : index
    %c0_93 = arith.constant 0 : index
    %238 = vector.load %arg18[%237, %c0_92, %c0_93] : memref<8x8x32xf32, #tpu.memory_space<vmem>>, vector<1x8x32xf32>
    %239 = vector.shape_cast %238 : vector<1x8x32xf32> to vector<8x32xf32>
    %240 = vector.shape_cast %236 : vector<8x32xf32> to vector<1x8x32xf32>
    tpu.vector_store %arg18[%237, %c0_92, %c0_93], %240 {strides = array<i32>} : memref<8x8x32xf32, #tpu.memory_space<vmem>>, vector<1x8x32xf32>,
    %c7_i32 = arith.constant 7 : i32
    %241 = arith.index_cast %c7_i32 : i32 to index
    %c0_94 = arith.constant 0 : index
    %c0_95 = arith.constant 0 : index
    %242 = vector.load %arg17[%241, %c0_94, %c0_95] : memref<8x8x96xf32, #tpu.memory_space<vmem>>, vector<1x8x96xf32>
    %243 = vector.shape_cast %242 : vector<1x8x96xf32> to vector<8x96xf32>
    %c0_96 = arith.constant 0 : index
    %c0_97 = arith.constant 0 : index
    %244 = vector.load %arg7[%c0_96, %c0_97] : memref<32x96xf32, #tpu.memory_space<vmem>>, vector<32x96xf32>
    %cst_98 = arith.constant dense<0.000000e+00> : vector<8x96xf32>
    %245 = tpu.matmul %236, %244, %cst_98 {dimension_numbers = #tpu.dot_dimension_numbers<[1], [0], [0], [1], [0, 0, 1, 1], [], []>} : vector<8x32xf32>, vector<32x96xf32>, vector<8x96xf32> -> vector<8x96xf32>
    %c0_99 = arith.constant 0 : index
    %c0_100 = arith.constant 0 : index
    %246 = vector.load %arg8[%c0_99, %c0_100] : memref<1x96xf32, #tpu.memory_space<vmem>>, vector<1x96xf32>
    %247 = vector.broadcast %246 : vector<1x96xf32> to vector<8x96xf32>
    %248 = arith.addf %245, %247 : vector<8x96xf32>
    %249 = vector.extract_strided_slice %243 {offsets = [0, 0], sizes = [8, 64], strides = [1, 1]} : vector<8x96xf32> to vector<8x64xf32>
    %250 = vector.extract_strided_slice %248 {offsets = [0, 0], sizes = [8, 64], strides = [1, 1]} : vector<8x96xf32> to vector<8x64xf32>
    %251 = arith.addf %249, %250 : vector<8x64xf32>
    %252 = arith.negf %251 : vector<8x64xf32>
    %253 = math.exp %252 : vector<8x64xf32>
    %cst_101 = arith.constant 1.000000e+00 : f32
    %254 = vector.broadcast %cst_101 : f32 to vector<8x64xf32>
    %255 = arith.addf %254, %253 : vector<8x64xf32>
    %256 = arith.divf %254, %255 : vector<8x64xf32>
    %257 = vector.extract_strided_slice %256 {offsets = [0, 0], sizes = [8, 32], strides = [1, 1]} : vector<8x64xf32> to vector<8x32xf32>
    %258 = vector.extract_strided_slice %256 {offsets = [0, 32], sizes = [8, 32], strides = [1, 1]} : vector<8x64xf32> to vector<8x32xf32>
    %259 = vector.extract_strided_slice %243 {offsets = [0, 64], sizes = [8, 32], strides = [1, 1]} : vector<8x96xf32> to vector<8x32xf32>
    %260 = vector.extract_strided_slice %248 {offsets = [0, 64], sizes = [8, 32], strides = [1, 1]} : vector<8x96xf32> to vector<8x32xf32>
    %261 = arith.mulf %257, %260 : vector<8x32xf32>
    %262 = arith.addf %259, %261 : vector<8x32xf32>
    %263 = math.tanh %262 : vector<8x32xf32>
    %cst_102 = arith.constant 1.000000e+00 : f32
    %264 = vector.broadcast %cst_102 : f32 to vector<8x32xf32>
    %265 = arith.subf %264, %258 : vector<8x32xf32>
    %266 = arith.mulf %265, %263 : vector<8x32xf32>
    %267 = arith.mulf %258, %236 : vector<8x32xf32>
    %268 = arith.addf %266, %267 : vector<8x32xf32>
    %269 = arith.index_cast %c7_i32 : i32 to index
    %c0_103 = arith.constant 0 : index
    %c0_104 = arith.constant 0 : index
    %270 = vector.load %arg18[%269, %c0_103, %c0_104] : memref<8x8x32xf32, #tpu.memory_space<vmem>>, vector<1x8x32xf32>
    %271 = vector.shape_cast %270 : vector<1x8x32xf32> to vector<8x32xf32>
    %272 = vector.shape_cast %268 : vector<8x32xf32> to vector<1x8x32xf32>
    tpu.vector_store %arg18[%269, %c0_103, %c0_104], %272 {strides = array<i32>} : memref<8x8x32xf32, #tpu.memory_space<vmem>>, vector<1x8x32xf32>,
    %c8_i32 = arith.constant 8 : i32
    %c0_105 = arith.constant 0 : index
    %c0_106 = arith.constant 0 : index
    %273 = vector.load %arg16[%c0_105, %c0_106] : memref<8x32xf32, #tpu.memory_space<vmem>>, vector<8x32xf32>
    tpu.vector_store %arg16[%c0_105, %c0_106], %268 {strides = array<i32>} : memref<8x32xf32, #tpu.memory_space<vmem>>, vector<8x32xf32>,
    %c0_107 = arith.constant 0 : index
    %c0_108 = arith.constant 0 : index
    %c0_109 = arith.constant 0 : index
    %274 = vector.load %arg18[%c0_107, %c0_108, %c0_109] : memref<8x8x32xf32, #tpu.memory_space<vmem>>, vector<8x8x32xf32>
    %275 = vector.shape_cast %274 : vector<8x8x32xf32> to vector<64x32xf32>
    %c0_110 = arith.constant 0 : index
    %c0_111 = arith.constant 0 : index
    %276 = vector.load %arg9[%c0_110, %c0_111] : memref<32x32xf32, #tpu.memory_space<vmem>>, vector<32x32xf32>
    %cst_112 = arith.constant dense<0.000000e+00> : vector<64x32xf32>
    %277 = tpu.matmul %275, %276, %cst_112 {dimension_numbers = #tpu.dot_dimension_numbers<[1], [0], [0], [1], [0, 0, 1, 1], [], []>} : vector<64x32xf32>, vector<32x32xf32>, vector<64x32xf32> -> vector<64x32xf32>
    %c0_113 = arith.constant 0 : index
    %c0_114 = arith.constant 0 : index
    %278 = vector.load %arg10[%c0_113, %c0_114] : memref<1x32xf32, #tpu.memory_space<vmem>>, vector<1x32xf32>
    %279 = vector.broadcast %278 : vector<1x32xf32> to vector<64x32xf32>
    %280 = arith.addf %277, %279 : vector<64x32xf32>
    %cst_115 = arith.constant 0.000000e+00 : f32
    %281 = vector.broadcast %cst_115 : f32 to vector<64x32xf32>
    %282 = arith.maximumf %280, %281 : vector<64x32xf32>
    %c0_116 = arith.constant 0 : index
    %c0_117 = arith.constant 0 : index
    %283 = vector.load %arg11[%c0_116, %c0_117] : memref<32x32xf32, #tpu.memory_space<vmem>>, vector<32x32xf32>
    %cst_118 = arith.constant dense<0.000000e+00> : vector<64x32xf32>
    %284 = tpu.matmul %282, %283, %cst_118 {dimension_numbers = #tpu.dot_dimension_numbers<[1], [0], [0], [1], [0, 0, 1, 1], [], []>} : vector<64x32xf32>, vector<32x32xf32>, vector<64x32xf32> -> vector<64x32xf32>
    %c0_119 = arith.constant 0 : index
    %c0_120 = arith.constant 0 : index
    %285 = vector.load %arg12[%c0_119, %c0_120] : memref<1x32xf32, #tpu.memory_space<vmem>>, vector<1x32xf32>
    %286 = vector.broadcast %285 : vector<1x32xf32> to vector<64x32xf32>
    %287 = arith.addf %284, %286 : vector<64x32xf32>
    %cst_121 = arith.constant 0.000000e+00 : f32
    %288 = vector.broadcast %cst_121 : f32 to vector<64x32xf32>
    %289 = arith.maximumf %287, %288 : vector<64x32xf32>
    %c0_122 = arith.constant 0 : index
    %c0_123 = arith.constant 0 : index
    %290 = vector.load %arg13[%c0_122, %c0_123] : memref<32x128xf32, #tpu.memory_space<vmem>>, vector<32x128xf32>
    %cst_124 = arith.constant dense<0.000000e+00> : vector<64x128xf32>
    %291 = tpu.matmul %289, %290, %cst_124 {dimension_numbers = #tpu.dot_dimension_numbers<[1], [0], [0], [1], [0, 0, 1, 1], [], []>} : vector<64x32xf32>, vector<32x128xf32>, vector<64x128xf32> -> vector<64x128xf32>
    %c0_125 = arith.constant 0 : index
    %c0_126 = arith.constant 0 : index
    %292 = vector.load %arg14[%c0_125, %c0_126] : memref<1x128xf32, #tpu.memory_space<vmem>>, vector<1x128xf32>
    %293 = vector.broadcast %292 : vector<1x128xf32> to vector<64x128xf32>
    %294 = arith.addf %291, %293 : vector<64x128xf32>
    %295 = vector.shape_cast %294 : vector<64x128xf32> to vector<8x8x128xf32>
    %c0_127 = arith.constant 0 : index
    %c0_128 = arith.constant 0 : index
    %c0_129 = arith.constant 0 : index
    %296 = vector.load %arg15[%c0_127, %c0_128, %c0_129] : memref<8x8x128xf32, #tpu.memory_space<vmem>>, vector<8x8x128xf32>
    tpu.vector_store %arg15[%c0_127, %c0_128, %c0_129], %295 {strides = array<i32>} : memref<8x8x128xf32, #tpu.memory_space<vmem>>, vector<8x8x128xf32>,
    return
  }
  func.func @transform_0(%arg0: i32) -> (i32, i32, i32) {
    %c0_i32 = arith.constant 0 : i32
    %c0_i32_0 = arith.constant 0 : i32
    %c0_i32_1 = arith.constant 0 : i32
    return %c0_i32, %arg0, %c0_i32_0 : i32, i32, i32
  }
  func.func @transform_1(%arg0: i32) -> (i32, i32) {
    %c0_i32 = arith.constant 0 : i32
    %c0_i32_0 = arith.constant 0 : i32
    return %arg0, %c0_i32 : i32, i32
  }
  func.func @transform_2(%arg0: i32) -> (i32, i32) {
    %c0_i32 = arith.constant 0 : i32
    %c0_i32_0 = arith.constant 0 : i32
    %c0_i32_1 = arith.constant 0 : i32
    return %c0_i32, %c0_i32_0 : i32, i32
  }
  func.func @transform_3(%arg0: i32) -> (i32, i32) {
    %c0_i32 = arith.constant 0 : i32
    %c0_i32_0 = arith.constant 0 : i32
    %c0_i32_1 = arith.constant 0 : i32
    return %c0_i32, %c0_i32_0 : i32, i32
  }
  func.func @transform_4(%arg0: i32) -> (i32, i32) {
    %c0_i32 = arith.constant 0 : i32
    %c0_i32_0 = arith.constant 0 : i32
    %c0_i32_1 = arith.constant 0 : i32
    return %c0_i32, %c0_i32_0 : i32, i32
  }
  func.func @transform_5(%arg0: i32) -> (i32, i32) {
    %c0_i32 = arith.constant 0 : i32
    %c0_i32_0 = arith.constant 0 : i32
    %c0_i32_1 = arith.constant 0 : i32
    return %c0_i32, %c0_i32_0 : i32, i32
  }
  func.func @transform_6(%arg0: i32) -> (i32, i32) {
    %c0_i32 = arith.constant 0 : i32
    %c0_i32_0 = arith.constant 0 : i32
    %c0_i32_1 = arith.constant 0 : i32
    return %c0_i32, %c0_i32_0 : i32, i32
  }
  func.func @transform_7(%arg0: i32) -> (i32, i32) {
    %c0_i32 = arith.constant 0 : i32
    %c0_i32_0 = arith.constant 0 : i32
    %c0_i32_1 = arith.constant 0 : i32
    return %c0_i32, %c0_i32_0 : i32, i32
  }
  func.func @transform_8(%arg0: i32) -> (i32, i32) {
    %c0_i32 = arith.constant 0 : i32
    %c0_i32_0 = arith.constant 0 : i32
    %c0_i32_1 = arith.constant 0 : i32
    return %c0_i32, %c0_i32_0 : i32, i32
  }
  func.func @transform_9(%arg0: i32) -> (i32, i32) {
    %c0_i32 = arith.constant 0 : i32
    %c0_i32_0 = arith.constant 0 : i32
    %c0_i32_1 = arith.constant 0 : i32
    return %c0_i32, %c0_i32_0 : i32, i32
  }
  func.func @transform_10(%arg0: i32) -> (i32, i32) {
    %c0_i32 = arith.constant 0 : i32
    %c0_i32_0 = arith.constant 0 : i32
    %c0_i32_1 = arith.constant 0 : i32
    return %c0_i32, %c0_i32_0 : i32, i32
  }
  func.func @transform_11(%arg0: i32) -> (i32, i32) {
    %c0_i32 = arith.constant 0 : i32
    %c0_i32_0 = arith.constant 0 : i32
    %c0_i32_1 = arith.constant 0 : i32
    return %c0_i32, %c0_i32_0 : i32, i32
  }
  func.func @transform_12(%arg0: i32) -> (i32, i32) {
    %c0_i32 = arith.constant 0 : i32
    %c0_i32_0 = arith.constant 0 : i32
    %c0_i32_1 = arith.constant 0 : i32
    return %c0_i32, %c0_i32_0 : i32, i32
  }
  func.func @transform_13(%arg0: i32) -> (i32, i32) {
    %c0_i32 = arith.constant 0 : i32
    %c0_i32_0 = arith.constant 0 : i32
    %c0_i32_1 = arith.constant 0 : i32
    return %c0_i32, %c0_i32_0 : i32, i32
  }
  func.func @transform_14(%arg0: i32) -> (i32, i32, i32) {
    %c0_i32 = arith.constant 0 : i32
    %c0_i32_0 = arith.constant 0 : i32
    %c0_i32_1 = arith.constant 0 : i32
    return %c0_i32, %arg0, %c0_i32_0 : i32, i32, i32
  }
  func.func @transform_15(%arg0: i32) -> (i32, i32) {
    %c0_i32 = arith.constant 0 : i32
    %c0_i32_0 = arith.constant 0 : i32
    return %arg0, %c0_i32 : i32, i32
  }
}

</mosaic_0001>

<llo_original>
// kernel: tpu_custom_call.1
$region0: #{tpu_custom_call.1}
  #allocation0 [shape = 'u32[]', space=smem, size = 0x4, offset = 0x4, fixed_abs, tag = 'smem constant byte address 0x4 - core index']
  #allocation1 [shape = 'u32[72,128]{1,0:T(1,128)}', space=vmem, size = 0x9000, scoped, tag = 'internal scratch']
  #allocation2 [shape = 'f32[8,8,96]{2,1,0:T(8,128)}', space=vmem, size = 0x8000, scoped, tag = 'scratch operand']
  #allocation3 [shape = 'f32[8,8,32]{2,1,0:T(8,128)}', space=vmem, size = 0x8000, scoped, tag = 'scratch operand']
  %s0 = inlined_call_operand.vmem [shape: f32[8,8,48], index: 0, kind: input, shape index: {}]
  %s1 = inlined_call_operand.vmem [shape: f32[8,32], index: 1, kind: input, shape index: {}]
  %s2 = inlined_call_operand.vmem [shape: f32[48,32], index: 2, kind: input, shape index: {}]
  %s3 = inlined_call_operand.vmem [shape: f32[1,32], index: 3, kind: input, shape index: {}]
  %s4 = inlined_call_operand.hbm [shape: f32[32,96], index: 4, kind: input, shape index: {}]
  %s5 = inlined_call_operand.vmem [shape: f32[1,96], index: 5, kind: input, shape index: {}]
  %s6 = inlined_call_operand.hbm [shape: f32[32,96], index: 6, kind: input, shape index: {}]
  %s7 = inlined_call_operand.vmem [shape: f32[1,96], index: 7, kind: input, shape index: {}]
  %s8 = inlined_call_operand.hbm [shape: f32[32,32], index: 8, kind: input, shape index: {}]
  %s9 = inlined_call_operand.vmem [shape: f32[1,32], index: 9, kind: input, shape index: {}]
  %s10 = inlined_call_operand.hbm [shape: f32[32,32], index: 10, kind: input, shape index: {}]
  %s11 = inlined_call_operand.vmem [shape: f32[1,32], index: 11, kind: input, shape index: {}]
  %s12 = inlined_call_operand.hbm [shape: f32[32,128], index: 12, kind: input, shape index: {}]
  %s13 = inlined_call_operand.vmem [shape: f32[1,128], index: 13, kind: input, shape index: {}]
  %s14 = inlined_call_operand.hbm [shape: f32[8,8,128], index: 14, kind: output, shape index: {0}]
  %s15 = inlined_call_operand.hbm [shape: f32[8,32], index: 15, kind: output, shape index: {1}]
  %16 = xla_tuple %s14, %s15
  %s17 = sld [smem:[#allocation0]]
  $region94: #{tpu_custom_call.1} parent=0
    _
  %s19 = ssub.s32 1, %s17
  %s20 = scalar_select 0, %s19, %s17
  $region1: #{tpu_custom_call.1} parent=0
    #allocation4 [shape = 'u8[16384]{0}', space=vmem, size = 0x4000, scoped, tag = 'input window, operand 4, single buffered']
    #allocation5 [shape = 's32[1]{0}', space=sflag, size = 0x4, scoped, tag = 'scoped memory for tpu_custom_call.1']
    #allocation6 [shape = 's32[1]{0}', space=sflag, size = 0x4, scoped, tag = 'scoped memory for tpu_custom_call.1']
    #allocation7 [shape = 'u8[16384]{0}', space=vmem, size = 0x4000, scoped, tag = 'input window, operand 6, single buffered']
    #allocation8 [shape = 's32[1]{0}', space=sflag, size = 0x4, scoped, tag = 'scoped memory for tpu_custom_call.1']
    #allocation9 [shape = 'u8[16384]{0}', space=vmem, size = 0x4000, scoped, tag = 'input window, operand 8, single buffered']
    #allocation10 [shape = 'u8[16384]{0}', space=vmem, size = 0x4000, scoped, tag = 'input window, operand 10, single buffered']
    #allocation11 [shape = 's32[1]{0}', space=sflag, size = 0x4, scoped, tag = 'scoped memory for tpu_custom_call.1']
    #allocation12 [shape = 'u8[16384]{0}', space=vmem, size = 0x4000, scoped, tag = 'input window, operand 12, single buffered']
    #allocation13 [shape = 'u8[32768]{0}', space=vmem, size = 0x8000, scoped, tag = 'output window, operand 0, single buffered']
    #allocation14 [shape = 'u8[4096]{0}', space=vmem, size = 0x1000, scoped, tag = 'output window, operand 1, single buffered']
    #allocation15 [shape = 's32[1]{0}', space=sflag, size = 0x4, scoped, tag = 'scoped memory for tpu_custom_call.1']
    %21 = vsyncpa [#allocation5], 0
    %22 = vsyncpa [#allocation8], 0
    %23 = vsyncpa [#allocation11], 0
    %24 = vsyncpa [#allocation6], 0
    %25 = vsyncpa [#allocation15], 0
    // Predicated region
    $region2: #{tpu_custom_call.1} parent=1 // pred_check
      _
    $region3: #{tpu_custom_call.1} parent=1 // pred_check_branch
      %27 = sbr.rel (0) target = $region5
    $region4: #{tpu_custom_call.1} parent=1 // pred_region
      _
    $region5: #{tpu_custom_call.1} parent=1 // pred_fallthru
      _
    // Predicated region
    $region6: #{tpu_custom_call.1} parent=1 // pred_check
      _
    $region7: #{tpu_custom_call.1} parent=1 // pred_check_branch
      %29 = sbr.rel (0) target = $region9
    $region8: #{tpu_custom_call.1} parent=1 // pred_region
      _
    $region9: #{tpu_custom_call.1} parent=1 // pred_fallthru
      _
    // Predicated region
    $region10: #{tpu_custom_call.1} parent=1 // pred_check
      _
    $region11: #{tpu_custom_call.1} parent=1 // pred_check_branch
      %31 = sbr.rel (0) target = $region13
    $region12: #{tpu_custom_call.1} parent=1 // pred_region
      _
    $region13: #{tpu_custom_call.1} parent=1 // pred_fallthru
      _
    // Predicated region
    $region14: #{tpu_custom_call.1} parent=1 // pred_check
      _
    $region15: #{tpu_custom_call.1} parent=1 // pred_check_branch
      %33 = sbr.rel (0) target = $region17
    $region16: #{tpu_custom_call.1} parent=1 // pred_region
      _
    $region17: #{tpu_custom_call.1} parent=1 // pred_fallthru
      _
    // Predicated region
    $region18: #{tpu_custom_call.1} parent=1 // pred_check
      _
    $region19: #{tpu_custom_call.1} parent=1 // pred_check_branch
      %35 = sbr.rel (0) target = $region21
    $region20: #{tpu_custom_call.1} parent=1 // pred_region
      %37 = vsyncadd [#allocation5], 0
      %s38 = sshll.u32 %s4, 4
      %s39 = int_to_ptr.hbm [resolvable:$true] %s38
      %s40 = sshll.u32 [#allocation4], 4
      %s41 = int_to_ptr.vmem [resolvable:$true] %s40
      %46 = dma.hbm_to_vmem [thread:$0]  %s39, 512, %s41, [#allocation5], 128, 128, 8
    $region21: #{tpu_custom_call.1} parent=1 // pred_fallthru
      _
    // Predicated region
    $region22: #{tpu_custom_call.1} parent=1 // pred_check
      _
    $region23: #{tpu_custom_call.1} parent=1 // pred_check_branch
      %48 = sbr.rel (0) target = $region25
    $region24: #{tpu_custom_call.1} parent=1 // pred_region
      _
    $region25: #{tpu_custom_call.1} parent=1 // pred_fallthru
      _
    // Predicated region
    $region26: #{tpu_custom_call.1} parent=1 // pred_check
      _
    $region27: #{tpu_custom_call.1} parent=1 // pred_check_branch
      %50 = sbr.rel (0) target = $region29
    $region28: #{tpu_custom_call.1} parent=1 // pred_region
      %52 = vsyncadd [#allocation8], 0
      %s53 = sshll.u32 %s6, 4
      %s54 = int_to_ptr.hbm [resolvable:$true] %s53
      %s55 = sshll.u32 [#allocation7], 4
      %s56 = int_to_ptr.vmem [resolvable:$true] %s55
      %61 = dma.hbm_to_vmem [thread:$0]  %s54, 512, %s56, [#allocation8], 128, 128, 8
    $region29: #{tpu_custom_call.1} parent=1 // pred_fallthru
      _
    // Predicated region
    $region30: #{tpu_custom_call.1} parent=1 // pred_check
      _
    $region31: #{tpu_custom_call.1} parent=1 // pred_check_branch
      %63 = sbr.rel (0) target = $region33
    $region32: #{tpu_custom_call.1} parent=1 // pred_region
      _
    $region33: #{tpu_custom_call.1} parent=1 // pred_fallthru
      _
    // Predicated region
    $region34: #{tpu_custom_call.1} parent=1 // pred_check
      _
    $region35: #{tpu_custom_call.1} parent=1 // pred_check_branch
      %65 = sbr.rel (0) target = $region37
    $region36: #{tpu_custom_call.1} parent=1 // pred_region
      %67 = vsyncadd [#allocation8], 0
      %s68 = sshll.u32 %s8, 4
      %s69 = int_to_ptr.hbm [resolvable:$true] %s68
      %s70 = sshll.u32 [#allocation9], 4
      %s71 = int_to_ptr.vmem [resolvable:$true] %s70
      %76 = dma.hbm_to_vmem [thread:$0]  %s69, 512, %s71, [#allocation8], 128, 128, 8
    $region37: #{tpu_custom_call.1} parent=1 // pred_fallthru
      _
    // Predicated region
    $region38: #{tpu_custom_call.1} parent=1 // pred_check
      _
    $region39: #{tpu_custom_call.1} parent=1 // pred_check_branch
      %78 = sbr.rel (0) target = $region41
    $region40: #{tpu_custom_call.1} parent=1 // pred_region
      _
    $region41: #{tpu_custom_call.1} parent=1 // pred_fallthru
      _
    // Predicated region
    $region42: #{tpu_custom_call.1} parent=1 // pred_check
      _
    $region43: #{tpu_custom_call.1} parent=1 // pred_check_branch
      %80 = sbr.rel (0) target = $region45
    $region44: #{tpu_custom_call.1} parent=1 // pred_region
      %82 = vsyncadd [#allocation11], 0
      %s83 = sshll.u32 %s10, 4
      %s84 = int_to_ptr.hbm [resolvable:$true] %s83
      %s85 = sshll.u32 [#allocation10], 4
      %s86 = int_to_ptr.vmem [resolvable:$true] %s85
      %91 = dma.hbm_to_vmem [thread:$0]  %s84, 512, %s86, [#allocation11], 128, 128, 8
    $region45: #{tpu_custom_call.1} parent=1 // pred_fallthru
      _
    // Predicated region
    $region46: #{tpu_custom_call.1} parent=1 // pred_check
      _
    $region47: #{tpu_custom_call.1} parent=1 // pred_check_branch
      %93 = sbr.rel (0) target = $region49
    $region48: #{tpu_custom_call.1} parent=1 // pred_region
      _
    $region49: #{tpu_custom_call.1} parent=1 // pred_fallthru
      _
    // Predicated region
    $region50: #{tpu_custom_call.1} parent=1 // pred_check
      _
    $region51: #{tpu_custom_call.1} parent=1 // pred_check_branch
      %95 = sbr.rel (0) target = $region53
    $region52: #{tpu_custom_call.1} parent=1 // pred_region
      %97 = vsyncadd [#allocation11], 0
      %s98 = sshll.u32 %s12, 4
      %s99 = int_to_ptr.hbm [resolvable:$true] %s98
      %s100 = sshll.u32 [#allocation12], 4
      %s101 = int_to_ptr.vmem [resolvable:$true] %s100
      %106 = dma.hbm_to_vmem [thread:$0]  %s99, 512, %s101, [#allocation11], 128, 128, 8
    $region53: #{tpu_custom_call.1} parent=1 // pred_fallthru
      _
    // Predicated region
    $region54: #{tpu_custom_call.1} parent=1 // pred_check
      _
    $region55: #{tpu_custom_call.1} parent=1 // pred_check_branch
      %108 = sbr.rel (0) target = $region57
    $region56: #{tpu_custom_call.1} parent=1 // pred_region
      _
    $region57: #{tpu_custom_call.1} parent=1 // pred_fallthru
      _
    // Predicated region
    $region58: #{tpu_custom_call.1} parent=1 // pred_check
      _
    $region59: #{tpu_custom_call.1} parent=1 // pred_check_branch
      %110 = sbr.rel (0) target = $region61
    $region60: #{tpu_custom_call.1} parent=1 // pred_region
      %112 = dma.done [#allocation5], 512
    $region61: #{tpu_custom_call.1} parent=1 // pred_fallthru
      _
    // Predicated region
    $region62: #{tpu_custom_call.1} parent=1 // pred_check
      _
    $region63: #{tpu_custom_call.1} parent=1 // pred_check_branch
      %114 = sbr.rel (0) target = $region65
    $region64: #{tpu_custom_call.1} parent=1 // pred_region
      %116 = dma.done [#allocation8], 512
    $region65: #{tpu_custom_call.1} parent=1 // pred_fallthru
      _
    // Predicated region
    $region66: #{tpu_custom_call.1} parent=1 // pred_check
      _
    $region67: #{tpu_custom_call.1} parent=1 // pred_check_branch
      %118 = sbr.rel (0) target = $region69
    $region68: #{tpu_custom_call.1} parent=1 // pred_region
      %120 = dma.done [#allocation8], 512
    $region69: #{tpu_custom_call.1} parent=1 // pred_fallthru
      _
    // Predicated region
    $region70: #{tpu_custom_call.1} parent=1 // pred_check
      _
    $region71: #{tpu_custom_call.1} parent=1 // pred_check_branch
      %122 = sbr.rel (0) target = $region73
    $region72: #{tpu_custom_call.1} parent=1 // pred_region
      %124 = dma.done [#allocation11], 512
    $region73: #{tpu_custom_call.1} parent=1 // pred_fallthru
      _
    // Predicated region
    $region74: #{tpu_custom_call.1} parent=1 // pred_check
      _
    $region75: #{tpu_custom_call.1} parent=1 // pred_check_branch
      %126 = sbr.rel (0) target = $region77
    $region76: #{tpu_custom_call.1} parent=1 // pred_region
      %128 = dma.done [#allocation11], 512
    $region77: #{tpu_custom_call.1} parent=1 // pred_fallthru
      _
    %v129 = vld [vmem:[%s0] sm:$0xff]
    %v130 = vld [vmem:[%s0 + $0x8] sm:$0xff]
    %v131 = vld [vmem:[%s0 + $0x10] sm:$0xff]
    %v132 = vld [vmem:[%s0 + $0x18] sm:$0xff]
    %v133 = vld [vmem:[%s0 + $0x20] sm:$0xff]
    %v134 = vld [vmem:[%s0 + $0x28] sm:$0xff]
    %v135 = vld [vmem:[%s0 + $0x30] sm:$0xff]
    %v136 = vld [vmem:[%s0 + $0x38] sm:$0xff]
    %v137 = vld [vmem:[%s2] sm:$0xff]
    %v138 = vld [vmem:[%s2 + $0x8] sm:$0xff]
    %v139 = vld [vmem:[%s2 + $0x10] sm:$0xff]
    %v140 = vld [vmem:[%s2 + $0x18] sm:$0xff]
    %v141 = vld [vmem:[%s2 + $0x20] sm:$0xff]
    %v142 = vld [vmem:[%s2 + $0x28] sm:$0xff]
    %v143 = vld [vmem:[%s3] sm:$0x1]
    %v145 = vperm.slane %v143, 0
    %vm147 = vcmask 392192
    %v149 = vsel %vm147, %v129, 0
    %v152 = vsel %vm147, %v130, 0
    %v155 = vsel %vm147, %v131, 0
    %v158 = vsel %vm147, %v132, 0
    %v161 = vsel %vm147, %v133, 0
    %v164 = vsel %vm147, %v134, 0
    %v167 = vsel %vm147, %v135, 0
    %v170 = vsel %vm147, %v136, 0
    %172 = vmatpush.msra.mxu0 0.0
    %173 = vmatpush.msra.mxu0 0.0
    %174 = vmatpush.msra.mxu0 0.0
    %175 = vmatpush.msra.mxu0 0.0
    %176 = vmatpush.msra.mxu0 0.0
    %177 = vmatpush.msra.mxu0 0.0
    %178 = vmatpush.msra.mxu0 0.0
    %179 = vmatpush.msra.mxu0 0.0
    %180 = vmatpush.msra.mxu0 0.0
    %181 = vmatpush.msra.mxu0 0.0
    %182 = vmatpush.msra.mxu0 %v142
    %183 = vmatpush.msra.mxu0 %v141
    %184 = vmatpush.msra.mxu0 %v140
    %185 = vmatpush.msra.mxu0 %v139
    %186 = vmatpush.msra.mxu0 %v138
    %187 = vmatpush.msra.mxu0 %v137
    %188 = vmatmul.f32.gmra.mxu0 %v149
    %v189 = vpop.f32.mrf.mxu0
    %v190 = vadd.f32 %v145, %v189
    %191 = vmatmul.f32.gmra.mxu0 %v152
    %v192 = vpop.f32.mrf.mxu0
    %v193 = vadd.f32 %v145, %v192
    %194 = vmatmul.f32.gmra.mxu0 %v155
    %v195 = vpop.f32.mrf.mxu0
    %v196 = vadd.f32 %v145, %v195
    %197 = vmatmul.f32.gmra.mxu0 %v158
    %v198 = vpop.f32.mrf.mxu0
    %v199 = vadd.f32 %v145, %v198
    %200 = vmatmul.f32.gmra.mxu0 %v161
    %v201 = vpop.f32.mrf.mxu0
    %v202 = vadd.f32 %v145, %v201
    %203 = vmatmul.f32.gmra.mxu0 %v164
    %v204 = vpop.f32.mrf.mxu0
    %v205 = vadd.f32 %v145, %v204
    %206 = vmatmul.f32.gmra.mxu0 %v167
    %v207 = vpop.f32.mrf.mxu0
    %v208 = vadd.f32 %v145, %v207
    %209 = vmatmul.f32.gmra.mxu0 %v170
    %v210 = vpop.f32.mrf.mxu0
    %v211 = vadd.f32 %v145, %v210
    %212 = vdwg.mxu0
    %v213 = vmax.f32 %v190, 0.0
    %v214 = vmax.f32 %v193, 0.0
    %v215 = vmax.f32 %v196, 0.0
    %v216 = vmax.f32 %v199, 0.0
    %v217 = vmax.f32 %v202, 0.0
    %v218 = vmax.f32 %v205, 0.0
    %v219 = vmax.f32 %v208, 0.0
    %v220 = vmax.f32 %v211, 0.0
    %v221 = vld [vmem:[#allocation4] sm:$0xff]
    %v222 = vld [vmem:[#allocation4 + $0x8] sm:$0xff]
    %v223 = vld [vmem:[#allocation4 + $0x10] sm:$0xff]
    %v224 = vld [vmem:[#allocation4 + $0x18] sm:$0xff]
    %v225 = vld [vmem:[%s5] sm:$0x1]
    %v227 = vperm.slane %v225, 0
    %vm229 = vcmask 261120
    %v231 = vsel %vm229, %v213, 0
    %v234 = vsel %vm229, %v214, 0
    %v237 = vsel %vm229, %v215, 0
    %v240 = vsel %vm229, %v216, 0
    %v243 = vsel %vm229, %v217, 0
    %v246 = vsel %vm229, %v218, 0
    %v249 = vsel %vm229, %v219, 0
    %v252 = vsel %vm229, %v220, 0
    %254 = vmatpush.msra.mxu0 0.0
    %255 = vmatpush.msra.mxu0 0.0
    %256 = vmatpush.msra.mxu0 0.0
    %257 = vmatpush.msra.mxu0 0.0
    %258 = vmatpush.msra.mxu0 0.0
    %259 = vmatpush.msra.mxu0 0.0
    %260 = vmatpush.msra.mxu0 0.0
    %261 = vmatpush.msra.mxu0 0.0
    %262 = vmatpush.msra.mxu0 0.0
    %263 = vmatpush.msra.mxu0 0.0
    %264 = vmatpush.msra.mxu0 0.0
    %265 = vmatpush.msra.mxu0 0.0
    %266 = vmatpush.msra.mxu0 %v224
    %267 = vmatpush.msra.mxu0 %v223
    %268 = vmatpush.msra.mxu0 %v222
    %269 = vmatpush.msra.mxu0 %v221
    %270 = vmatmul.f32.gmra.mxu0 %v231
    %v271 = vpop.f32.mrf.mxu0
    %v272 = vadd.f32 %v227, %v271
    %273 = vmatmul.f32.gmra.mxu0 %v234
    %v274 = vpop.f32.mrf.mxu0
    %v275 = vadd.f32 %v227, %v274
    %276 = vmatmul.f32.gmra.mxu0 %v237
    %v277 = vpop.f32.mrf.mxu0
    %v278 = vadd.f32 %v227, %v277
    %279 = vmatmul.f32.gmra.mxu0 %v240
    %v280 = vpop.f32.mrf.mxu0
    %v281 = vadd.f32 %v227, %v280
    %282 = vmatmul.f32.gmra.mxu0 %v243
    %v283 = vpop.f32.mrf.mxu0
    %v284 = vadd.f32 %v227, %v283
    %285 = vmatmul.f32.gmra.mxu0 %v246
    %v286 = vpop.f32.mrf.mxu0
    %v287 = vadd.f32 %v227, %v286
    %288 = vmatmul.f32.gmra.mxu0 %v249
    %v289 = vpop.f32.mrf.mxu0
    %v290 = vadd.f32 %v227, %v289
    %291 = vmatmul.f32.gmra.mxu0 %v252
    %v292 = vpop.f32.mrf.mxu0
    %v293 = vadd.f32 %v227, %v292
    %294 = vdwg.mxu0
    %vm295 = vcmask 785408
    %296 = vst.msk [vmem:[#allocation2] sm:$0xff] %vm295, %v272
    %297 = vst.msk [vmem:[#allocation2 + $0x8] sm:$0xff] %vm295, %v275
    %298 = vst.msk [vmem:[#allocation2 + $0x10] sm:$0xff] %vm295, %v278
    %299 = vst.msk [vmem:[#allocation2 + $0x18] sm:$0xff] %vm295, %v281
    %300 = vst.msk [vmem:[#allocation2 + $0x20] sm:$0xff] %vm295, %v284
    %301 = vst.msk [vmem:[#allocation2 + $0x28] sm:$0xff] %vm295, %v287
    %302 = vst.msk [vmem:[#allocation2 + $0x30] sm:$0xff] %vm295, %v290
    %303 = vst.msk [vmem:[#allocation2 + $0x38] sm:$0xff] %vm295, %v293
    %v304 = vld [vmem:[%s1] sm:$0xff]
    %v305 = vld [vmem:[#allocation2] sm:$0xff]
    %v306 = vld [vmem:[#allocation7] sm:$0xff]
    %v307 = vld [vmem:[#allocation7 + $0x8] sm:$0xff]
    %v308 = vld [vmem:[#allocation7 + $0x10] sm:$0xff]
    %v309 = vld [vmem:[#allocation7 + $0x18] sm:$0xff]
    %v310 = vld [vmem:[%s7] sm:$0x1]
    %v312 = vperm.slane %v310, 0
    %v315 = vsel %vm229, %v304, 0
    %317 = vmatpush.msra.mxu0 0.0
    %318 = vmatpush.msra.mxu0 0.0
    %319 = vmatpush.msra.mxu0 0.0
    %320 = vmatpush.msra.mxu0 0.0
    %321 = vmatpush.msra.mxu0 0.0
    %322 = vmatpush.msra.mxu0 0.0
    %323 = vmatpush.msra.mxu0 0.0
    %324 = vmatpush.msra.mxu0 0.0
    %325 = vmatpush.msra.mxu0 0.0
    %326 = vmatpush.msra.mxu0 0.0
    %327 = vmatpush.msra.mxu0 0.0
    %328 = vmatpush.msra.mxu0 0.0
    %329 = vmatpush.msra.mxu0 %v309
    %330 = vmatpush.msra.mxu0 %v308
    %331 = vmatpush.msra.mxu0 %v307
    %332 = vmatpush.msra.mxu0 %v306
    %333 = vmatmul.f32.gmra.mxu0 %v315
    %v334 = vpop.f32.mrf.mxu0
    %v335 = vadd.f32 %v312, %v334
    %336 = vdwg.mxu0
    %v337 = vadd.f32 %v305, %v335
    %v338 = vxor.u32 %v337, 2147483648
    %v339 = vmul.f32 %v338, 1.442695
    %v340 = vpow.pop %v339
    %v341 = vadd.f32 %v340, 1.0
    %v342 = vrcp.pop %v341
    %v343 = vmul.f32 %v341, %v342
    %v344 = vsub.f32 1.0, %v343
    %v345 = vmul.f32 %v342, %v344
    %v346 = vadd.f32 %v342, %v345
    %vm347 = vweird.f32 %v341
    %vm348 = vweird.f32 %v342
    %vm349 = vmor %vm347, %vm348
    %v350 = vsel %vm349, %v342, %v346
    %v351 = vand.u32 2147483647, %v341
    %vm352 = vcmp.eq.f32.partialorder %v351, 8.507059e+37
    %v353 = vand.u32 %v341, 2147483648
    %v354 = vor.u32 1.1754944e-38, %v353
    %v355 = vsel %vm352, %v354, %v350
    %v356 = vmul.f32 1.0, %v355
    %358 = vrot.lane.b32.xlu0 %v335, 64
    %v359 = vpop.permute.xlu0 %358
    %v361 = vmul.f32 %v356, %v359
    %363 = vrot.lane.b32.xlu0 %v361, 64
    %v364 = vpop.permute.xlu0 %363
    %v366 = vadd.f32 %v305, %v364
    %v367 = vtanh.pop %v366
    %v368 = vsub.f32 1.0, %v356
    %370 = vrot.lane.b32.xlu0 %v367, 96
    %v371 = vpop.permute.xlu0 %370
    %v373 = vmul.f32 %v368, %v371
    %374 = vrot.lane.b32.xlu0 %v304, 32
    %v375 = vpop.permute.xlu0 %374
    %v377 = vmul.f32 %v356, %v375
    %v378 = vadd.f32 %v373, %v377
    %380 = vrot.lane.b32.xlu0 %v378, 96
    %v381 = vpop.permute.xlu0 %380
    %383 = vst.msk [vmem:[#allocation3] sm:$0xff] %vm229, %v381
    %s384 = scalar_lea.vmem [#allocation2], 8
    %v385 = vld [vmem:[%s384] sm:$0xff]
    %v386 = vld [vmem:[#allocation7] sm:$0xff]
    %v387 = vld [vmem:[#allocation7 + $0x8] sm:$0xff]
    %v388 = vld [vmem:[#allocation7 + $0x10] sm:$0xff]
    %v389 = vld [vmem:[#allocation7 + $0x18] sm:$0xff]
    %v390 = vld [vmem:[%s7] sm:$0x1]
    %v392 = vperm.slane %v390, 0
    %v394 = vsel %vm229, %v381, 0
    %396 = vmatpush.msra.mxu0 0.0
    %397 = vmatpush.msra.mxu0 0.0
    %398 = vmatpush.msra.mxu0 0.0
    %399 = vmatpush.msra.mxu0 0.0
    %400 = vmatpush.msra.mxu0 0.0
    %401 = vmatpush.msra.mxu0 0.0
    %402 = vmatpush.msra.mxu0 0.0
    %403 = vmatpush.msra.mxu0 0.0
    %404 = vmatpush.msra.mxu0 0.0
    %405 = vmatpush.msra.mxu0 0.0
    %406 = vmatpush.msra.mxu0 0.0
    %407 = vmatpush.msra.mxu0 0.0
    %408 = vmatpush.msra.mxu0 %v389
    %409 = vmatpush.msra.mxu0 %v388
    %410 = vmatpush.msra.mxu0 %v387
    %411 = vmatpush.msra.mxu0 %v386
    %412 = vmatmul.f32.gmra.mxu0 %v394
    %v413 = vpop.f32.mrf.mxu0
    %v414 = vadd.f32 %v392, %v413
    %415 = vdwg.mxu0
    %v416 = vadd.f32 %v385, %v414
    %v417 = vxor.u32 %v416, 2147483648
    %v418 = vmul.f32 %v417, 1.442695
    %v419 = vpow.pop %v418
    %v420 = vadd.f32 %v419, 1.0
    %v421 = vrcp.pop %v420
    %v422 = vmul.f32 %v420, %v421
    %v423 = vsub.f32 1.0, %v422
    %v424 = vmul.f32 %v421, %v423
    %v425 = vadd.f32 %v421, %v424
    %vm426 = vweird.f32 %v420
    %vm427 = vweird.f32 %v421
    %vm428 = vmor %vm426, %vm427
    %v429 = vsel %vm428, %v421, %v425
    %v430 = vand.u32 2147483647, %v420
    %vm431 = vcmp.eq.f32.partialorder %v430, 8.507059e+37
    %v432 = vand.u32 %v420, 2147483648
    %v433 = vor.u32 1.1754944e-38, %v432
    %v434 = vsel %vm431, %v433, %v429
    %v435 = vmul.f32 1.0, %v434
    %437 = vrot.lane.b32.xlu0 %v414, 64
    %v438 = vpop.permute.xlu0 %437
    %v440 = vmul.f32 %v435, %v438
    %442 = vrot.lane.b32.xlu0 %v440, 64
    %v443 = vpop.permute.xlu0 %442
    %v445 = vadd.f32 %v385, %v443
    %v446 = vtanh.pop %v445
    %v447 = vsub.f32 1.0, %v435
    %449 = vrot.lane.b32.xlu0 %v446, 96
    %v450 = vpop.permute.xlu0 %449
    %v452 = vmul.f32 %v447, %v450
    %v453 = vmul.f32 %v435, %v378
    %v454 = vadd.f32 %v452, %v453
    %456 = vrot.lane.b32.xlu0 %v454, 96
    %v457 = vpop.permute.xlu0 %456
    %s459 = scalar_lea.vmem [#allocation3], 8
    %460 = vst.msk [vmem:[%s459] sm:$0xff] %vm229, %v457
    %s461 = scalar_lea.vmem [#allocation2], 16
    %v462 = vld [vmem:[%s461] sm:$0xff]
    %v463 = vld [vmem:[#allocation7] sm:$0xff]
    %v464 = vld [vmem:[#allocation7 + $0x8] sm:$0xff]
    %v465 = vld [vmem:[#allocation7 + $0x10] sm:$0xff]
    %v466 = vld [vmem:[#allocation7 + $0x18] sm:$0xff]
    %v467 = vld [vmem:[%s7] sm:$0x1]
    %v469 = vperm.slane %v467, 0
    %v471 = vsel %vm229, %v457, 0
    %473 = vmatpush.msra.mxu0 0.0
    %474 = vmatpush.msra.mxu0 0.0
    %475 = vmatpush.msra.mxu0 0.0
    %476 = vmatpush.msra.mxu0 0.0
    %477 = vmatpush.msra.mxu0 0.0
    %478 = vmatpush.msra.mxu0 0.0
    %479 = vmatpush.msra.mxu0 0.0
    %480 = vmatpush.msra.mxu0 0.0
    %481 = vmatpush.msra.mxu0 0.0
    %482 = vmatpush.msra.mxu0 0.0
    %483 = vmatpush.msra.mxu0 0.0
    %484 = vmatpush.msra.mxu0 0.0
    %485 = vmatpush.msra.mxu0 %v466
    %486 = vmatpush.msra.mxu0 %v465
    %487 = vmatpush.msra.mxu0 %v464
    %488 = vmatpush.msra.mxu0 %v463
    %489 = vmatmul.f32.gmra.mxu0 %v471
    %v490 = vpop.f32.mrf.mxu0
    %v491 = vadd.f32 %v469, %v490
    %492 = vdwg.mxu0
    %v493 = vadd.f32 %v462, %v491
    %v494 = vxor.u32 %v493, 2147483648
    %v495 = vmul.f32 %v494, 1.442695
    %v496 = vpow.pop %v495
    %v497 = vadd.f32 %v496, 1.0
    %v498 = vrcp.pop %v497
    %v499 = vmul.f32 %v497, %v498
    %v500 = vsub.f32 1.0, %v499
    %v501 = vmul.f32 %v498, %v500
    %v502 = vadd.f32 %v498, %v501
    %vm503 = vweird.f32 %v497
    %vm504 = vweird.f32 %v498
    %vm505 = vmor %vm503, %vm504
    %v506 = vsel %vm505, %v498, %v502
    %v507 = vand.u32 2147483647, %v497
    %vm508 = vcmp.eq.f32.partialorder %v507, 8.507059e+37
    %v509 = vand.u32 %v497, 2147483648
    %v510 = vor.u32 1.1754944e-38, %v509
    %v511 = vsel %vm508, %v510, %v506
    %v512 = vmul.f32 1.0, %v511
    %514 = vrot.lane.b32.xlu0 %v491, 64
    %v515 = vpop.permute.xlu0 %514
    %v517 = vmul.f32 %v512, %v515
    %519 = vrot.lane.b32.xlu0 %v517, 64
    %v520 = vpop.permute.xlu0 %519
    %v522 = vadd.f32 %v462, %v520
    %v523 = vtanh.pop %v522
    %v524 = vsub.f32 1.0, %v512
    %526 = vrot.lane.b32.xlu0 %v523, 96
    %v527 = vpop.permute.xlu0 %526
    %v529 = vmul.f32 %v524, %v527
    %v530 = vmul.f32 %v512, %v454
    %v531 = vadd.f32 %v529, %v530
    %533 = vrot.lane.b32.xlu0 %v531, 96
    %v534 = vpop.permute.xlu0 %533
    %s536 = scalar_lea.vmem [#allocation3], 16
    %537 = vst.msk [vmem:[%s536] sm:$0xff] %vm229, %v534
    %s538 = scalar_lea.vmem [#allocation2], 24
    %v539 = vld [vmem:[%s538] sm:$0xff]
    %v540 = vld [vmem:[#allocation7] sm:$0xff]
    %v541 = vld [vmem:[#allocation7 + $0x8] sm:$0xff]
    %v542 = vld [vmem:[#allocation7 + $0x10] sm:$0xff]
    %v543 = vld [vmem:[#allocation7 + $0x18] sm:$0xff]
    %v544 = vld [vmem:[%s7] sm:$0x1]
    %v546 = vperm.slane %v544, 0
    %v548 = vsel %vm229, %v534, 0
    %550 = vmatpush.msra.mxu0 0.0
    %551 = vmatpush.msra.mxu0 0.0
    %552 = vmatpush.msra.mxu0 0.0
    %553 = vmatpush.msra.mxu0 0.0
    %554 = vmatpush.msra.mxu0 0.0
    %555 = vmatpush.msra.mxu0 0.0
    %556 = vmatpush.msra.mxu0 0.0
    %557 = vmatpush.msra.mxu0 0.0
    %558 = vmatpush.msra.mxu0 0.0
    %559 = vmatpush.msra.mxu0 0.0
    %560 = vmatpush.msra.mxu0 0.0
    %561 = vmatpush.msra.mxu0 0.0
    %562 = vmatpush.msra.mxu0 %v543
    %563 = vmatpush.msra.mxu0 %v542
    %564 = vmatpush.msra.mxu0 %v541
    %565 = vmatpush.msra.mxu0 %v540
    %566 = vmatmul.f32.gmra.mxu0 %v548
    %v567 = vpop.f32.mrf.mxu0
    %v568 = vadd.f32 %v546, %v567
    %569 = vdwg.mxu0
    %v570 = vadd.f32 %v539, %v568
    %v571 = vxor.u32 %v570, 2147483648
    %v572 = vmul.f32 %v571, 1.442695
    %v573 = vpow.pop %v572
    %v574 = vadd.f32 %v573, 1.0
    %v575 = vrcp.pop %v574
    %v576 = vmul.f32 %v574, %v575
    %v577 = vsub.f32 1.0, %v576
    %v578 = vmul.f32 %v575, %v577
    %v579 = vadd.f32 %v575, %v578
    %vm580 = vweird.f32 %v574
    %vm581 = vweird.f32 %v575
    %vm582 = vmor %vm580, %vm581
    %v583 = vsel %vm582, %v575, %v579
    %v584 = vand.u32 2147483647, %v574
    %vm585 = vcmp.eq.f32.partialorder %v584, 8.507059e+37
    %v586 = vand.u32 %v574, 2147483648
    %v587 = vor.u32 1.1754944e-38, %v586
    %v588 = vsel %vm585, %v587, %v583
    %v589 = vmul.f32 1.0, %v588
    %591 = vrot.lane.b32.xlu0 %v568, 64
    %v592 = vpop.permute.xlu0 %591
    %v594 = vmul.f32 %v589, %v592
    %596 = vrot.lane.b32.xlu0 %v594, 64
    %v597 = vpop.permute.xlu0 %596
    %v599 = vadd.f32 %v539, %v597
    %v600 = vtanh.pop %v599
    %v601 = vsub.f32 1.0, %v589
    %603 = vrot.lane.b32.xlu0 %v600, 96
    %v604 = vpop.permute.xlu0 %603
    %v606 = vmul.f32 %v601, %v604
    %v607 = vmul.f32 %v589, %v531
    %v608 = vadd.f32 %v606, %v607
    %610 = vrot.lane.b32.xlu0 %v608, 96
    %v611 = vpop.permute.xlu0 %610
    %s613 = scalar_lea.vmem [#allocation3], 24
    %614 = vst.msk [vmem:[%s613] sm:$0xff] %vm229, %v611
    %s615 = scalar_lea.vmem [#allocation2], 32
    %v616 = vld [vmem:[%s615] sm:$0xff]
    %v617 = vld [vmem:[#allocation7] sm:$0xff]
    %v618 = vld [vmem:[#allocation7 + $0x8] sm:$0xff]
    %v619 = vld [vmem:[#allocation7 + $0x10] sm:$0xff]
    %v620 = vld [vmem:[#allocation7 + $0x18] sm:$0xff]
    %v621 = vld [vmem:[%s7] sm:$0x1]
    %v623 = vperm.slane %v621, 0
    %v625 = vsel %vm229, %v611, 0
    %627 = vmatpush.msra.mxu0 0.0
    %628 = vmatpush.msra.mxu0 0.0
    %629 = vmatpush.msra.mxu0 0.0
    %630 = vmatpush.msra.mxu0 0.0
    %631 = vmatpush.msra.mxu0 0.0
    %632 = vmatpush.msra.mxu0 0.0
    %633 = vmatpush.msra.mxu0 0.0
    %634 = vmatpush.msra.mxu0 0.0
    %635 = vmatpush.msra.mxu0 0.0
    %636 = vmatpush.msra.mxu0 0.0
    %637 = vmatpush.msra.mxu0 0.0
    %638 = vmatpush.msra.mxu0 0.0
    %639 = vmatpush.msra.mxu0 %v620
    %640 = vmatpush.msra.mxu0 %v619
    %641 = vmatpush.msra.mxu0 %v618
    %642 = vmatpush.msra.mxu0 %v617
    %643 = vmatmul.f32.gmra.mxu0 %v625
    %v644 = vpop.f32.mrf.mxu0
    %v645 = vadd.f32 %v623, %v644
    %646 = vdwg.mxu0
    %v647 = vadd.f32 %v616, %v645
    %v648 = vxor.u32 %v647, 2147483648
    %v649 = vmul.f32 %v648, 1.442695
    %v650 = vpow.pop %v649
    %v651 = vadd.f32 %v650, 1.0
    %v652 = vrcp.pop %v651
    %v653 = vmul.f32 %v651, %v652
    %v654 = vsub.f32 1.0, %v653
    %v655 = vmul.f32 %v652, %v654
    %v656 = vadd.f32 %v652, %v655
    %vm657 = vweird.f32 %v651
    %vm658 = vweird.f32 %v652
    %vm659 = vmor %vm657, %vm658
    %v660 = vsel %vm659, %v652, %v656
    %v661 = vand.u32 2147483647, %v651
    %vm662 = vcmp.eq.f32.partialorder %v661, 8.507059e+37
    %v663 = vand.u32 %v651, 2147483648
    %v664 = vor.u32 1.1754944e-38, %v663
    %v665 = vsel %vm662, %v664, %v660
    %v666 = vmul.f32 1.0, %v665
    %668 = vrot.lane.b32.xlu0 %v645, 64
    %v669 = vpop.permute.xlu0 %668
    %v671 = vmul.f32 %v666, %v669
    %673 = vrot.lane.b32.xlu0 %v671, 64
    %v674 = vpop.permute.xlu0 %673
    %v676 = vadd.f32 %v616, %v674
    %v677 = vtanh.pop %v676
    %v678 = vsub.f32 1.0, %v666
    %680 = vrot.lane.b32.xlu0 %v677, 96
    %v681 = vpop.permute.xlu0 %680
    %v683 = vmul.f32 %v678, %v681
    %v684 = vmul.f32 %v666, %v608
    %v685 = vadd.f32 %v683, %v684
    %687 = vrot.lane.b32.xlu0 %v685, 96
    %v688 = vpop.permute.xlu0 %687
    %s690 = scalar_lea.vmem [#allocation3], 32
    %691 = vst.msk [vmem:[%s690] sm:$0xff] %vm229, %v688
    %s692 = scalar_lea.vmem [#allocation2], 40
    %v693 = vld [vmem:[%s692] sm:$0xff]
    %v694 = vld [vmem:[#allocation7] sm:$0xff]
    %v695 = vld [vmem:[#allocation7 + $0x8] sm:$0xff]
    %v696 = vld [vmem:[#allocation7 + $0x10] sm:$0xff]
    %v697 = vld [vmem:[#allocation7 + $0x18] sm:$0xff]
    %v698 = vld [vmem:[%s7] sm:$0x1]
    %v700 = vperm.slane %v698, 0
    %v702 = vsel %vm229, %v688, 0
    %704 = vmatpush.msra.mxu0 0.0
    %705 = vmatpush.msra.mxu0 0.0
    %706 = vmatpush.msra.mxu0 0.0
    %707 = vmatpush.msra.mxu0 0.0
    %708 = vmatpush.msra.mxu0 0.0
    %709 = vmatpush.msra.mxu0 0.0
    %710 = vmatpush.msra.mxu0 0.0
    %711 = vmatpush.msra.mxu0 0.0
    %712 = vmatpush.msra.mxu0 0.0
    %713 = vmatpush.msra.mxu0 0.0
    %714 = vmatpush.msra.mxu0 0.0
    %715 = vmatpush.msra.mxu0 0.0
    %716 = vmatpush.msra.mxu0 %v697
    %717 = vmatpush.msra.mxu0 %v696
    %718 = vmatpush.msra.mxu0 %v695
    %719 = vmatpush.msra.mxu0 %v694
    %720 = vmatmul.f32.gmra.mxu0 %v702
    %v721 = vpop.f32.mrf.mxu0
    %v722 = vadd.f32 %v700, %v721
    %723 = vdwg.mxu0
    %v724 = vadd.f32 %v693, %v722
    %v725 = vxor.u32 %v724, 2147483648
    %v726 = vmul.f32 %v725, 1.442695
    %v727 = vpow.pop %v726
    %v728 = vadd.f32 %v727, 1.0
    %v729 = vrcp.pop %v728
    %v730 = vmul.f32 %v728, %v729
    %v731 = vsub.f32 1.0, %v730
    %v732 = vmul.f32 %v729, %v731
    %v733 = vadd.f32 %v729, %v732
    %vm734 = vweird.f32 %v728
    %vm735 = vweird.f32 %v729
    %vm736 = vmor %vm734, %vm735
    %v737 = vsel %vm736, %v729, %v733
    %v738 = vand.u32 2147483647, %v728
    %vm739 = vcmp.eq.f32.partialorder %v738, 8.507059e+37
    %v740 = vand.u32 %v728, 2147483648
    %v741 = vor.u32 1.1754944e-38, %v740
    %v742 = vsel %vm739, %v741, %v737
    %v743 = vmul.f32 1.0, %v742
    %745 = vrot.lane.b32.xlu0 %v722, 64
    %v746 = vpop.permute.xlu0 %745
    %v748 = vmul.f32 %v743, %v746
    %750 = vrot.lane.b32.xlu0 %v748, 64
    %v751 = vpop.permute.xlu0 %750
    %v753 = vadd.f32 %v693, %v751
    %v754 = vtanh.pop %v753
    %v755 = vsub.f32 1.0, %v743
    %757 = vrot.lane.b32.xlu0 %v754, 96
    %v758 = vpop.permute.xlu0 %757
    %v760 = vmul.f32 %v755, %v758
    %v761 = vmul.f32 %v743, %v685
    %v762 = vadd.f32 %v760, %v761
    %764 = vrot.lane.b32.xlu0 %v762, 96
    %v765 = vpop.permute.xlu0 %764
    %s767 = scalar_lea.vmem [#allocation3], 40
    %768 = vst.msk [vmem:[%s767] sm:$0xff] %vm229, %v765
    %s769 = scalar_lea.vmem [#allocation2], 48
    %v770 = vld [vmem:[%s769] sm:$0xff]
    %v771 = vld [vmem:[#allocation7] sm:$0xff]
    %v772 = vld [vmem:[#allocation7 + $0x8] sm:$0xff]
    %v773 = vld [vmem:[#allocation7 + $0x10] sm:$0xff]
    %v774 = vld [vmem:[#allocation7 + $0x18] sm:$0xff]
    %v775 = vld [vmem:[%s7] sm:$0x1]
    %v777 = vperm.slane %v775, 0
    %v779 = vsel %vm229, %v765, 0
    %781 = vmatpush.msra.mxu0 0.0
    %782 = vmatpush.msra.mxu0 0.0
    %783 = vmatpush.msra.mxu0 0.0
    %784 = vmatpush.msra.mxu0 0.0
    %785 = vmatpush.msra.mxu0 0.0
    %786 = vmatpush.msra.mxu0 0.0
    %787 = vmatpush.msra.mxu0 0.0
    %788 = vmatpush.msra.mxu0 0.0
    %789 = vmatpush.msra.mxu0 0.0
    %790 = vmatpush.msra.mxu0 0.0
    %791 = vmatpush.msra.mxu0 0.0
    %792 = vmatpush.msra.mxu0 0.0
    %793 = vmatpush.msra.mxu0 %v774
    %794 = vmatpush.msra.mxu0 %v773
    %795 = vmatpush.msra.mxu0 %v772
    %796 = vmatpush.msra.mxu0 %v771
    %797 = vmatmul.f32.gmra.mxu0 %v779
    %v798 = vpop.f32.mrf.mxu0
    %v799 = vadd.f32 %v777, %v798
    %800 = vdwg.mxu0
    %v801 = vadd.f32 %v770, %v799
    %v802 = vxor.u32 %v801, 2147483648
    %v803 = vmul.f32 %v802, 1.442695
    %v804 = vpow.pop %v803
    %v805 = vadd.f32 %v804, 1.0
    %v806 = vrcp.pop %v805
    %v807 = vmul.f32 %v805, %v806
    %v808 = vsub.f32 1.0, %v807
    %v809 = vmul.f32 %v806, %v808
    %v810 = vadd.f32 %v806, %v809
    %vm811 = vweird.f32 %v805
    %vm812 = vweird.f32 %v806
    %vm813 = vmor %vm811, %vm812
    %v814 = vsel %vm813, %v806, %v810
    %v815 = vand.u32 2147483647, %v805
    %vm816 = vcmp.eq.f32.partialorder %v815, 8.507059e+37
    %v817 = vand.u32 %v805, 2147483648
    %v818 = vor.u32 1.1754944e-38, %v817
    %v819 = vsel %vm816, %v818, %v814
    %v820 = vmul.f32 1.0, %v819
    %822 = vrot.lane.b32.xlu0 %v799, 64
    %v823 = vpop.permute.xlu0 %822
    %v825 = vmul.f32 %v820, %v823
    %827 = vrot.lane.b32.xlu0 %v825, 64
    %v828 = vpop.permute.xlu0 %827
    %v830 = vadd.f32 %v770, %v828
    %v831 = vtanh.pop %v830
    %v832 = vsub.f32 1.0, %v820
    %834 = vrot.lane.b32.xlu0 %v831, 96
    %v835 = vpop.permute.xlu0 %834
    %v837 = vmul.f32 %v832, %v835
    %v838 = vmul.f32 %v820, %v762
    %v839 = vadd.f32 %v837, %v838
    %841 = vrot.lane.b32.xlu0 %v839, 96
    %v842 = vpop.permute.xlu0 %841
    %s844 = scalar_lea.vmem [#allocation3], 48
    %845 = vst.msk [vmem:[%s844] sm:$0xff] %vm229, %v842
    %s846 = scalar_lea.vmem [#allocation2], 56
    %v847 = vld [vmem:[%s846] sm:$0xff]
    %v848 = vld [vmem:[#allocation7] sm:$0xff]
    %v849 = vld [vmem:[#allocation7 + $0x8] sm:$0xff]
    %v850 = vld [vmem:[#allocation7 + $0x10] sm:$0xff]
    %v851 = vld [vmem:[#allocation7 + $0x18] sm:$0xff]
    %v852 = vld [vmem:[%s7] sm:$0x1]
    %v854 = vperm.slane %v852, 0
    %v856 = vsel %vm229, %v842, 0
    %858 = vmatpush.msra.mxu0 0.0
    %859 = vmatpush.msra.mxu0 0.0
    %860 = vmatpush.msra.mxu0 0.0
    %861 = vmatpush.msra.mxu0 0.0
    %862 = vmatpush.msra.mxu0 0.0
    %863 = vmatpush.msra.mxu0 0.0
    %864 = vmatpush.msra.mxu0 0.0
    %865 = vmatpush.msra.mxu0 0.0
    %866 = vmatpush.msra.mxu0 0.0
    %867 = vmatpush.msra.mxu0 0.0
    %868 = vmatpush.msra.mxu0 0.0
    %869 = vmatpush.msra.mxu0 0.0
    %870 = vmatpush.msra.mxu0 %v851
    %871 = vmatpush.msra.mxu0 %v850
    %872 = vmatpush.msra.mxu0 %v849
    %873 = vmatpush.msra.mxu0 %v848
    %874 = vmatmul.f32.gmra.mxu0 %v856
    %v875 = vpop.f32.mrf.mxu0
    %v876 = vadd.f32 %v854, %v875
    %877 = vdwg.mxu0
    %v878 = vadd.f32 %v847, %v876
    %v879 = vxor.u32 %v878, 2147483648
    %v880 = vmul.f32 %v879, 1.442695
    %v881 = vpow.pop %v880
    %v882 = vadd.f32 %v881, 1.0
    %v883 = vrcp.pop %v882
    %v884 = vmul.f32 %v882, %v883
    %v885 = vsub.f32 1.0, %v884
    %v886 = vmul.f32 %v883, %v885
    %v887 = vadd.f32 %v883, %v886
    %vm888 = vweird.f32 %v882
    %vm889 = vweird.f32 %v883
    %vm890 = vmor %vm888, %vm889
    %v891 = vsel %vm890, %v883, %v887
    %v892 = vand.u32 2147483647, %v882
    %vm893 = vcmp.eq.f32.partialorder %v892, 8.507059e+37
    %v894 = vand.u32 %v882, 2147483648
    %v895 = vor.u32 1.1754944e-38, %v894
    %v896 = vsel %vm893, %v895, %v891
    %v897 = vmul.f32 1.0, %v896
    %899 = vrot.lane.b32.xlu0 %v876, 64
    %v900 = vpop.permute.xlu0 %899
    %v902 = vmul.f32 %v897, %v900
    %904 = vrot.lane.b32.xlu0 %v902, 64
    %v905 = vpop.permute.xlu0 %904
    %v907 = vadd.f32 %v847, %v905
    %v908 = vtanh.pop %v907
    %v909 = vsub.f32 1.0, %v897
    %911 = vrot.lane.b32.xlu0 %v908, 96
    %v912 = vpop.permute.xlu0 %911
    %v914 = vmul.f32 %v909, %v912
    %v915 = vmul.f32 %v897, %v839
    %v916 = vadd.f32 %v914, %v915
    %918 = vrot.lane.b32.xlu0 %v916, 96
    %v919 = vpop.permute.xlu0 %918
    %s921 = scalar_lea.vmem [#allocation3], 56
    %922 = vst.msk [vmem:[%s921] sm:$0xff] %vm229, %v919
    %923 = vst.msk [vmem:[#allocation14] sm:$0xff] %vm229, %v919
    %v924 = vld [vmem:[#allocation3] sm:$0xff]
    %v925 = vld [vmem:[#allocation3 + $0x8] sm:$0xff]
    %v926 = vld [vmem:[#allocation3 + $0x10] sm:$0xff]
    %v927 = vld [vmem:[#allocation3 + $0x18] sm:$0xff]
    %v928 = vld [vmem:[#allocation3 + $0x20] sm:$0xff]
    %v929 = vld [vmem:[#allocation3 + $0x28] sm:$0xff]
    %v930 = vld [vmem:[#allocation3 + $0x30] sm:$0xff]
    %v931 = vld [vmem:[#allocation3 + $0x38] sm:$0xff]
    %v932 = vld [vmem:[#allocation9] sm:$0xff]
    %v933 = vld [vmem:[#allocation9 + $0x8] sm:$0xff]
    %v934 = vld [vmem:[#allocation9 + $0x10] sm:$0xff]
    %v935 = vld [vmem:[#allocation9 + $0x18] sm:$0xff]
    %v936 = vld [vmem:[%s9] sm:$0x1]
    %v938 = vperm.slane %v936, 0
    %v941 = vsel %vm229, %v924, 0
    %v944 = vsel %vm229, %v925, 0
    %v947 = vsel %vm229, %v926, 0
    %v950 = vsel %vm229, %v927, 0
    %v953 = vsel %vm229, %v928, 0
    %v956 = vsel %vm229, %v929, 0
    %v959 = vsel %vm229, %v930, 0
    %v962 = vsel %vm229, %v931, 0
    %964 = vmatpush.msra.mxu0 0.0
    %965 = vmatpush.msra.mxu0 0.0
    %966 = vmatpush.msra.mxu0 0.0
    %967 = vmatpush.msra.mxu0 0.0
    %968 = vmatpush.msra.mxu0 0.0
    %969 = vmatpush.msra.mxu0 0.0
    %970 = vmatpush.msra.mxu0 0.0
    %971 = vmatpush.msra.mxu0 0.0
    %972 = vmatpush.msra.mxu0 0.0
    %973 = vmatpush.msra.mxu0 0.0
    %974 = vmatpush.msra.mxu0 0.0
    %975 = vmatpush.msra.mxu0 0.0
    %976 = vmatpush.msra.mxu0 %v935
    %977 = vmatpush.msra.mxu0 %v934
    %978 = vmatpush.msra.mxu0 %v933
    %979 = vmatpush.msra.mxu0 %v932
    %980 = vmatmul.f32.gmra.mxu0 %v941
    %v981 = vpop.f32.mrf.mxu0
    %v982 = vadd.f32 %v938, %v981
    %983 = vmatmul.f32.gmra.mxu0 %v944
    %v984 = vpop.f32.mrf.mxu0
    %v985 = vadd.f32 %v938, %v984
    %986 = vmatmul.f32.gmra.mxu0 %v947
    %v987 = vpop.f32.mrf.mxu0
    %v988 = vadd.f32 %v938, %v987
    %989 = vmatmul.f32.gmra.mxu0 %v950
    %v990 = vpop.f32.mrf.mxu0
    %v991 = vadd.f32 %v938, %v990
    %992 = vmatmul.f32.gmra.mxu0 %v953
    %v993 = vpop.f32.mrf.mxu0
    %v994 = vadd.f32 %v938, %v993
    %995 = vmatmul.f32.gmra.mxu0 %v956
    %v996 = vpop.f32.mrf.mxu0
    %v997 = vadd.f32 %v938, %v996
    %998 = vmatmul.f32.gmra.mxu0 %v959
    %v999 = vpop.f32.mrf.mxu0
    %v1000 = vadd.f32 %v938, %v999
    %1001 = vmatmul.f32.gmra.mxu0 %v962
    %v1002 = vpop.f32.mrf.mxu0
    %v1003 = vadd.f32 %v938, %v1002
    %1004 = vdwg.mxu0
    %v1005 = vmax.f32 %v982, 0.0
    %v1006 = vmax.f32 %v985, 0.0
    %v1007 = vmax.f32 %v988, 0.0
    %v1008 = vmax.f32 %v991, 0.0
    %v1009 = vmax.f32 %v994, 0.0
    %v1010 = vmax.f32 %v997, 0.0
    %v1011 = vmax.f32 %v1000, 0.0
    %v1012 = vmax.f32 %v1003, 0.0
    %v1013 = vld [vmem:[#allocation10] sm:$0xff]
    %v1014 = vld [vmem:[#allocation10 + $0x8] sm:$0xff]
    %v1015 = vld [vmem:[#allocation10 + $0x10] sm:$0xff]
    %v1016 = vld [vmem:[#allocation10 + $0x18] sm:$0xff]
    %v1017 = vld [vmem:[%s11] sm:$0x1]
    %v1019 = vperm.slane %v1017, 0
    %v1022 = vsel %vm229, %v1005, 0
    %v1025 = vsel %vm229, %v1006, 0
    %v1028 = vsel %vm229, %v1007, 0
    %v1031 = vsel %vm229, %v1008, 0
    %v1034 = vsel %vm229, %v1009, 0
    %v1037 = vsel %vm229, %v1010, 0
    %v1040 = vsel %vm229, %v1011, 0
    %v1043 = vsel %vm229, %v1012, 0
    %1045 = vmatpush.msra.mxu0 0.0
    %1046 = vmatpush.msra.mxu0 0.0
    %1047 = vmatpush.msra.mxu0 0.0
    %1048 = vmatpush.msra.mxu0 0.0
    %1049 = vmatpush.msra.mxu0 0.0
    %1050 = vmatpush.msra.mxu0 0.0
    %1051 = vmatpush.msra.mxu0 0.0
    %1052 = vmatpush.msra.mxu0 0.0
    %1053 = vmatpush.msra.mxu0 0.0
    %1054 = vmatpush.msra.mxu0 0.0
    %1055 = vmatpush.msra.mxu0 0.0
    %1056 = vmatpush.msra.mxu0 0.0
    %1057 = vmatpush.msra.mxu0 %v1016
    %1058 = vmatpush.msra.mxu0 %v1015
    %1059 = vmatpush.msra.mxu0 %v1014
    %1060 = vmatpush.msra.mxu0 %v1013
    %1061 = vmatmul.f32.gmra.mxu0 %v1022
    %v1062 = vpop.f32.mrf.mxu0
    %v1063 = vadd.f32 %v1019, %v1062
    %1064 = vmatmul.f32.gmra.mxu0 %v1025
    %v1065 = vpop.f32.mrf.mxu0
    %v1066 = vadd.f32 %v1019, %v1065
    %1067 = vmatmul.f32.gmra.mxu0 %v1028
    %v1068 = vpop.f32.mrf.mxu0
    %v1069 = vadd.f32 %v1019, %v1068
    %1070 = vmatmul.f32.gmra.mxu0 %v1031
    %v1071 = vpop.f32.mrf.mxu0
    %v1072 = vadd.f32 %v1019, %v1071
    %1073 = vmatmul.f32.gmra.mxu0 %v1034
    %v1074 = vpop.f32.mrf.mxu0
    %v1075 = vadd.f32 %v1019, %v1074
    %1076 = vmatmul.f32.gmra.mxu0 %v1037
    %v1077 = vpop.f32.mrf.mxu0
    %v1078 = vadd.f32 %v1019, %v1077
    %1079 = vmatmul.f32.gmra.mxu0 %v1040
    %v1080 = vpop.f32.mrf.mxu0
    %v1081 = vadd.f32 %v1019, %v1080
    %1082 = vmatmul.f32.gmra.mxu0 %v1043
    %v1083 = vpop.f32.mrf.mxu0
    %v1084 = vadd.f32 %v1019, %v1083
    %1085 = vdwg.mxu0
    %v1086 = vmax.f32 %v1063, 0.0
    %v1087 = vmax.f32 %v1066, 0.0
    %v1088 = vmax.f32 %v1069, 0.0
    %v1089 = vmax.f32 %v1072, 0.0
    %v1090 = vmax.f32 %v1075, 0.0
    %v1091 = vmax.f32 %v1078, 0.0
    %v1092 = vmax.f32 %v1081, 0.0
    %v1093 = vmax.f32 %v1084, 0.0
    %v1094 = vld [vmem:[#allocation12] sm:$0xff]
    %v1095 = vld [vmem:[#allocation12 + $0x8] sm:$0xff]
    %v1096 = vld [vmem:[#allocation12 + $0x10] sm:$0xff]
    %v1097 = vld [vmem:[#allocation12 + $0x18] sm:$0xff]
    %v1098 = vld [vmem:[%s13] sm:$0x1]
    %v1100 = vperm.slane %v1098, 0
    %v1103 = vsel %vm229, %v1086, 0
    %v1106 = vsel %vm229, %v1087, 0
    %v1109 = vsel %vm229, %v1088, 0
    %v1112 = vsel %vm229, %v1089, 0
    %v1115 = vsel %vm229, %v1090, 0
    %v1118 = vsel %vm229, %v1091, 0
    %v1121 = vsel %vm229, %v1092, 0
    %v1124 = vsel %vm229, %v1093, 0
    %1126 = vmatpush.msra.mxu0 0.0
    %1127 = vmatpush.msra.mxu0 0.0
    %1128 = vmatpush.msra.mxu0 0.0
    %1129 = vmatpush.msra.mxu0 0.0
    %1130 = vmatpush.msra.mxu0 0.0
    %1131 = vmatpush.msra.mxu0 0.0
    %1132 = vmatpush.msra.mxu0 0.0
    %1133 = vmatpush.msra.mxu0 0.0
    %1134 = vmatpush.msra.mxu0 0.0
    %1135 = vmatpush.msra.mxu0 0.0
    %1136 = vmatpush.msra.mxu0 0.0
    %1137 = vmatpush.msra.mxu0 0.0
    %1138 = vmatpush.msra.mxu0 %v1097
    %1139 = vmatpush.msra.mxu0 %v1096
    %1140 = vmatpush.msra.mxu0 %v1095
    %1141 = vmatpush.msra.mxu0 %v1094
    %1142 = vmatmul.f32.gmra.mxu0 %v1103
    %v1143 = vpop.f32.mrf.mxu0
    %v1144 = vadd.f32 %v1100, %v1143
    %1145 = vmatmul.f32.gmra.mxu0 %v1106
    %v1146 = vpop.f32.mrf.mxu0
    %v1147 = vadd.f32 %v1100, %v1146
    %1148 = vmatmul.f32.gmra.mxu0 %v1109
    %v1149 = vpop.f32.mrf.mxu0
    %v1150 = vadd.f32 %v1100, %v1149
    %1151 = vmatmul.f32.gmra.mxu0 %v1112
    %v1152 = vpop.f32.mrf.mxu0
    %v1153 = vadd.f32 %v1100, %v1152
    %1154 = vmatmul.f32.gmra.mxu0 %v1115
    %v1155 = vpop.f32.mrf.mxu0
    %v1156 = vadd.f32 %v1100, %v1155
    %1157 = vmatmul.f32.gmra.mxu0 %v1118
    %v1158 = vpop.f32.mrf.mxu0
    %v1159 = vadd.f32 %v1100, %v1158
    %1160 = vmatmul.f32.gmra.mxu0 %v1121
    %v1161 = vpop.f32.mrf.mxu0
    %v1162 = vadd.f32 %v1100, %v1161
    %1163 = vmatmul.f32.gmra.mxu0 %v1124
    %v1164 = vpop.f32.mrf.mxu0
    %v1165 = vadd.f32 %v1100, %v1164
    %1166 = vdwg.mxu0
    %1167 = vst [vmem:[#allocation13] sm:$0xff] %v1144
    %1168 = vst [vmem:[#allocation13 + $0x8] sm:$0xff] %v1147
    %1169 = vst [vmem:[#allocation13 + $0x10] sm:$0xff] %v1150
    %1170 = vst [vmem:[#allocation13 + $0x18] sm:$0xff] %v1153
    %1171 = vst [vmem:[#allocation13 + $0x20] sm:$0xff] %v1156
    %1172 = vst [vmem:[#allocation13 + $0x28] sm:$0xff] %v1159
    %1173 = vst [vmem:[#allocation13 + $0x30] sm:$0xff] %v1162
    %1174 = vst [vmem:[#allocation13 + $0x38] sm:$0xff] %v1165
    // Predicated region
    $region78: #{tpu_custom_call.1} parent=1 // pred_check
      _
    $region79: #{tpu_custom_call.1} parent=1 // pred_check_branch
      %1176 = sbr.rel (0) target = $region81
    $region80: #{tpu_custom_call.1} parent=1 // pred_region
      %1178 = vsyncadd [#allocation6], 0
      %s1179 = sshll.u32 [#allocation13], 4
      %s1180 = int_to_ptr.vmem [resolvable:$true] %s1179
      %s1181 = sshll.u32 %s14, 4
      %s1182 = int_to_ptr.hbm [resolvable:$true] %s1181
      %1187 = dma.vmem_to_hbm [thread:$0]  %s1180, 1024, %s1182, [#allocation6], 128, 128, 8
    $region81: #{tpu_custom_call.1} parent=1 // pred_fallthru
      _
    // Predicated region
    $region82: #{tpu_custom_call.1} parent=1 // pred_check
      _
    $region83: #{tpu_custom_call.1} parent=1 // pred_check_branch
      %1189 = sbr.rel (0) target = $region85
    $region84: #{tpu_custom_call.1} parent=1 // pred_region
      %1191 = vsyncadd [#allocation15], 0
      %s1193 = sshll.u32 [#allocation14], 4
      %s1194 = int_to_ptr.vmem [resolvable:$true] %s1193
      %s1195 = sshll.u32 %s15, 4
      %s1196 = int_to_ptr.hbm [resolvable:$true] %s1195
      %1198 = dma.vmem_to_hbm [thread:$0]  %s1194, 128, %s1196, [#allocation15]
    $region85: #{tpu_custom_call.1} parent=1 // pred_fallthru
      _
    // Predicated region
    $region86: #{tpu_custom_call.1} parent=1 // pred_check
      _
    $region87: #{tpu_custom_call.1} parent=1 // pred_check_branch
      %1200 = sbr.rel (0) target = $region89
    $region88: #{tpu_custom_call.1} parent=1 // pred_region
      %1202 = dma.done [#allocation6], 1024
    $region89: #{tpu_custom_call.1} parent=1 // pred_fallthru
      _
    // Predicated region
    $region90: #{tpu_custom_call.1} parent=1 // pred_check
      _
    $region91: #{tpu_custom_call.1} parent=1 // pred_check_branch
      %1204 = sbr.rel (0) target = $region93
    $region92: #{tpu_custom_call.1} parent=1 // pred_region
      %1206 = dma.done [#allocation15], 128
    $region93: #{tpu_custom_call.1} parent=1 // pred_fallthru
      _
    %1207 = vsyncpa [#allocation5], 1
    %1208 = vsyncpa [#allocation8], 1
    %1209 = vsyncpa [#allocation11], 1
    %1210 = vsyncpa [#allocation6], 1
    %1211 = vsyncpa [#allocation15], 1

</llo_original>
